<compile_context>
chip_gen: v6e
topology: v6e:2x2x1
jax: 0.10.0
libtpu: 0.0.40
codegen_flags: <defaults>
</compile_context>

<pallas_src>
import jax
import jax.numpy as jnp
from jax.experimental import pallas as pl
from jax.experimental.pallas import tpu as pltpu

F_SIZE = 1024  # hard-coded in the PyTorch module


def _fusion_kernel(v1_ref, v2_ref, w1_ref, w2_ref, b_ref, o_ref):
    tn = o_ref.shape[1]
    j = pl.program_id(0)

    # Full activations (small: B x F) are needed for the matmul over all F
    # input features.  Cast to bf16 so both MXU operands are in its native
    # input dtype; accumulation stays f32.
    v1_b = v1_ref[...].astype(jnp.bfloat16)
    v2_b = v2_ref[...].astype(jnp.bfloat16)

    # gate0(cat(v1, v2))[:, tile] == v1 @ W1[:, tile] + v2 @ W2[:, tile] + b[tile]
    logits = jnp.dot(v1_b, w1_ref[...], preferred_element_type=jnp.float32)
    logits += jnp.dot(v2_b, w2_ref[...], preferred_element_type=jnp.float32)
    logits += b_ref[...]                      # (1, tn) broadcast over batch
    t = jax.nn.sigmoid(logits)                # EUP transcendentals

    # The blend only needs this tile's columns of v1/v2 (full f32 precision).
    start = pl.multiple_of(j * tn, tn)
    v1_t = v1_ref[:, pl.ds(start, tn)]
    v2_t = v2_ref[:, pl.ds(start, tn)]
    # t*v1 + (1-t)*v2 == v2 + t*(v1 - v2)  (one fewer VPU multiply)
    o_ref[...] = (v2_t + t * (v1_t - v2_t)).astype(o_ref.dtype)


def fusion_forward(vec1, vec2, gate_w, gate_b, *, tile_n=256):
    """vec1, vec2: (B, F) float32.
    gate_w: (2F, F)  (= PyTorch gate0.weight.T).  gate_b: (F,)."""
    B, F = vec1.shape
    assert gate_w.shape == (2 * F, F)
    assert F % tile_n == 0 and tile_n % 128 == 0

    # Weights are ~95% of HBM bytes -> stream them as bf16.
    w1 = gate_w[:F, :].astype(jnp.bfloat16)   # multiplies vec1
    w2 = gate_w[F:, :].astype(jnp.bfloat16)   # multiplies vec2
    b2d = gate_b.reshape(1, F).astype(jnp.float32)

    grid = (F // tile_n,)

    cost = pl.CostEstimate(
        flops=2 * B * (2 * F) * F,
        transcendentals=B * F,
        bytes_accessed=(2 * F * F) * 2 + (3 * B * F + F) * 4,
    )

    return pl.pallas_call(
        _fusion_kernel,
        out_shape=jax.ShapeDtypeStruct((B, F), vec1.dtype),
        grid_spec=pltpu.PrefetchScalarGridSpec(
            num_scalar_prefetch=0,
            grid=grid,
            in_specs=[
                pl.BlockSpec((B, F), lambda j: (0, 0)),        # vec1 (full, stays resident)
                pl.BlockSpec((B, F), lambda j: (0, 0)),        # vec2 (full, stays resident)
                pl.BlockSpec((F, tile_n), lambda j: (0, j)),   # W1 column tile (bf16)
                pl.BlockSpec((F, tile_n), lambda j: (0, j)),   # W2 column tile (bf16)
                pl.BlockSpec((1, tile_n), lambda j: (0, j)),   # bias tile
            ],
            out_specs=pl.BlockSpec((B, tile_n), lambda j: (0, j)),
        ),
        compiler_params=pltpu.CompilerParams(
            dimension_semantics=("parallel",),
        ),
        cost_estimate=cost,
    )(vec1, vec2, w1, w2, b2d)


def fusion_reference_f32(vec1, vec2, gate_w, gate_b):
    """Pure-f32 reference matching the PyTorch module exactly."""
    vec = jnp.concatenate([vec1, vec2], axis=1)
    t = jax.nn.sigmoid(vec @ gate_w + gate_b)
    return t * vec1 + (1.0 - t) * vec2


def fusion_reference_bf16(vec1, vec2, gate_w, gate_b):
    """Reference with the same bf16 matmul-input rounding as the kernel."""
    vec = jnp.concatenate([vec1, vec2], axis=1).astype(jnp.bfloat16)
    wb = gate_w.astype(jnp.bfloat16)
    logits = jnp.dot(vec, wb, preferred_element_type=jnp.float32) + gate_b
    t = jax.nn.sigmoid(logits)
    return vec2 + t * (vec1 - vec2)


if __name__ == "__main__":
    key = jax.random.PRNGKey(0)
    k1, k2, kw, kb = jax.random.split(key, 4)

    B = 8                      # small batch
    F = F_SIZE                 # 1024, fixed by the module

    vec1 = jax.random.normal(k1, (B, F), dtype=jnp.float32)
    vec2 = jax.random.normal(k2, (B, F), dtype=jnp.float32)

    # Deterministic init mimicking nn.Linear default: U(-1/sqrt(fan_in), +).
    bound = 1.0 / jnp.sqrt(2.0 * F)
    gate_w = jax.random.uniform(kw, (2 * F, F), jnp.float32, -bound, bound)
    gate_b = jax.random.uniform(kb, (F,), jnp.float32, -bound, bound)

    out = fusion_forward(vec1, vec2, gate_w, gate_b)
    out = jax.block_until_ready(out)

    ref_match = fusion_reference_bf16(vec1, vec2, gate_w, gate_b)
    ref_f32 = fusion_reference_f32(vec1, vec2, gate_w, gate_b)

    assert out.shape == (B, F)
    assert out.dtype == jnp.float32
    # Tight check against a reference using identical bf16 matmul-input rounding.
    assert jnp.allclose(out, ref_match, atol=1e-3, rtol=1e-3)
    # Looser sanity check against the exact f32 module semantics
    # (difference comes only from bf16 rounding of the gate matmul inputs).
    assert jnp.allclose(out, ref_f32, atol=5e-2, rtol=5e-2)

    print("KERNEL_OK")
</pallas_src>

<mosaic_0001>
module attributes {stable_mosaic.version = 11 : i64} {
  func.func @_fusion_kernel(%arg0: i32, %arg1: memref<8x1024xf32, #tpu.memory_space<vmem>>, %arg2: memref<8x1024xf32, #tpu.memory_space<vmem>>, %arg3: memref<1024x256xbf16, #tpu.memory_space<vmem>>, %arg4: memref<1024x256xbf16, #tpu.memory_space<vmem>>, %arg5: memref<1x256xf32, #tpu.memory_space<vmem>>, %arg6: memref<8x256xf32, #tpu.memory_space<vmem>>) attributes {dimension_semantics = [#tpu.dimension_semantics<parallel>], iteration_bounds = array<i64: 4>, scalar_prefetch = 0 : i64, scratch_operands = 0 : i64, tpu.core_type = #tpu.core_type<tc>, window_params = [{pipeline_mode = #tpu.pipeline_mode<synchronous>, transform_indices = @transform_0, window_bounds = array<i64: 8, 1024>}, {pipeline_mode = #tpu.pipeline_mode<synchronous>, transform_indices = @transform_1, window_bounds = array<i64: 8, 1024>}, {transform_indices = @transform_2, window_bounds = array<i64: 1024, 256>}, {transform_indices = @transform_3, window_bounds = array<i64: 1024, 256>}, {transform_indices = @transform_4, window_bounds = array<i64: 1, 256>}, {transform_indices = @transform_5, window_bounds = array<i64: 8, 256>}]} {
    %c0 = arith.constant 0 : index
    %c0_0 = arith.constant 0 : index
    %0 = vector.load %arg1[%c0, %c0_0] : memref<8x1024xf32, #tpu.memory_space<vmem>>, vector<8x1024xf32>
    %1 = arith.truncf %0 : vector<8x1024xf32> to vector<8x1024xbf16>
    %c0_1 = arith.constant 0 : index
    %c0_2 = arith.constant 0 : index
    %2 = vector.load %arg2[%c0_1, %c0_2] : memref<8x1024xf32, #tpu.memory_space<vmem>>, vector<8x1024xf32>
    %3 = arith.truncf %2 : vector<8x1024xf32> to vector<8x1024xbf16>
    %c0_3 = arith.constant 0 : index
    %c0_4 = arith.constant 0 : index
    %4 = vector.load %arg3[%c0_3, %c0_4] : memref<1024x256xbf16, #tpu.memory_space<vmem>>, vector<1024x256xbf16>
    %cst = arith.constant dense<0.000000e+00> : vector<8x256xf32>
    %5 = tpu.matmul %1, %4, %cst {dimension_numbers = #tpu.dot_dimension_numbers<[1], [0], [0], [1], [0, 0, 1, 1], [], []>} : vector<8x1024xbf16>, vector<1024x256xbf16>, vector<8x256xf32> -> vector<8x256xf32>
    %c0_5 = arith.constant 0 : index
    %c0_6 = arith.constant 0 : index
    %6 = vector.load %arg4[%c0_5, %c0_6] : memref<1024x256xbf16, #tpu.memory_space<vmem>>, vector<1024x256xbf16>
    %cst_7 = arith.constant dense<0.000000e+00> : vector<8x256xf32>
    %7 = tpu.matmul %3, %6, %cst_7 {dimension_numbers = #tpu.dot_dimension_numbers<[1], [0], [0], [1], [0, 0, 1, 1], [], []>} : vector<8x1024xbf16>, vector<1024x256xbf16>, vector<8x256xf32> -> vector<8x256xf32>
    %8 = arith.addf %5, %7 : vector<8x256xf32>
    %c0_8 = arith.constant 0 : index
    %c0_9 = arith.constant 0 : index
    %9 = vector.load %arg5[%c0_8, %c0_9] : memref<1x256xf32, #tpu.memory_space<vmem>>, vector<1x256xf32>
    %10 = vector.broadcast %9 : vector<1x256xf32> to vector<8x256xf32>
    %11 = arith.addf %8, %10 : vector<8x256xf32>
    %12 = arith.negf %11 : vector<8x256xf32>
    %13 = math.exp %12 : vector<8x256xf32>
    %cst_10 = arith.constant 1.000000e+00 : f32
    %14 = vector.broadcast %cst_10 : f32 to vector<8x256xf32>
    %15 = arith.addf %14, %13 : vector<8x256xf32>
    %16 = arith.divf %14, %15 : vector<8x256xf32>
    %c256_i32 = arith.constant 256 : i32
    %17 = arith.muli %arg0, %c256_i32 : i32
    %18 = tpu.assume_multiple %17, 256 : i32
    %c0_11 = arith.constant 0 : index
    %19 = arith.index_cast %18 : i32 to index
    %20 = vector.load %arg1[%c0_11, %19] : memref<8x1024xf32, #tpu.memory_space<vmem>>, vector<8x256xf32>
    %c0_12 = arith.constant 0 : index
    %21 = arith.index_cast %18 : i32 to index
    %22 = vector.load %arg2[%c0_12, %21] : memref<8x1024xf32, #tpu.memory_space<vmem>>, vector<8x256xf32>
    %23 = arith.subf %20, %22 : vector<8x256xf32>
    %24 = arith.mulf %16, %23 : vector<8x256xf32>
    %25 = arith.addf %22, %24 : vector<8x256xf32>
    %c0_13 = arith.constant 0 : index
    %c0_14 = arith.constant 0 : index
    %26 = vector.load %arg6[%c0_13, %c0_14] : memref<8x256xf32, #tpu.memory_space<vmem>>, vector<8x256xf32>
    tpu.vector_store %arg6[%c0_13, %c0_14], %25 {strides = array<i32>} : memref<8x256xf32, #tpu.memory_space<vmem>>, vector<8x256xf32>,
    return
  }
  func.func @transform_0(%arg0: i32) -> (i32, i32) {
    %c0_i32 = arith.constant 0 : i32
    %c0_i32_0 = arith.constant 0 : i32
    %c0_i32_1 = arith.constant 0 : i32
    return %c0_i32, %c0_i32_0 : i32, i32
  }
  func.func @transform_1(%arg0: i32) -> (i32, i32) {
    %c0_i32 = arith.constant 0 : i32
    %c0_i32_0 = arith.constant 0 : i32
    %c0_i32_1 = arith.constant 0 : i32
    return %c0_i32, %c0_i32_0 : i32, i32
  }
  func.func @transform_2(%arg0: i32) -> (i32, i32) {
    %c0_i32 = arith.constant 0 : i32
    %c0_i32_0 = arith.constant 0 : i32
    return %c0_i32, %arg0 : i32, i32
  }
  func.func @transform_3(%arg0: i32) -> (i32, i32) {
    %c0_i32 = arith.constant 0 : i32
    %c0_i32_0 = arith.constant 0 : i32
    return %c0_i32, %arg0 : i32, i32
  }
  func.func @transform_4(%arg0: i32) -> (i32, i32) {
    %c0_i32 = arith.constant 0 : i32
    %c0_i32_0 = arith.constant 0 : i32
    return %c0_i32, %arg0 : i32, i32
  }
  func.func @transform_5(%arg0: i32) -> (i32, i32) {
    %c0_i32 = arith.constant 0 : i32
    %c0_i32_0 = arith.constant 0 : i32
    return %c0_i32, %arg0 : i32, i32
  }
}

</mosaic_0001>

<llo_original>
// kernel: tpu_custom_call.1
$region0: #{tpu_custom_call.1}
  #allocation0 [shape = 'u32[]', space=smem, size = 0x4, offset = 0x4, fixed_abs, tag = 'smem constant byte address 0x4 - core index']
  #allocation1 [shape = 'u32[144,128]{1,0:T(1,128)}', space=vmem, size = 0x12000, scoped, tag = 'internal scratch']
  %s0 = inlined_call_operand.hbm [shape: f32[8,1024], index: 0, kind: input, shape index: {}]
  %s1 = inlined_call_operand.hbm [shape: f32[8,1024], index: 1, kind: input, shape index: {}]
  %s2 = inlined_call_operand.hbm [shape: bf16[1024,1024], index: 2, kind: input, shape index: {}]
  %s3 = inlined_call_operand.hbm [shape: bf16[1024,1024], index: 3, kind: input, shape index: {}]
  %s4 = inlined_call_operand.hbm [shape: f32[1,1024], index: 4, kind: input, shape index: {}]
  %s5 = inlined_call_operand.hbm [shape: f32[8,1024], index: 5, kind: output, shape index: {}]
  %s6 = sld [smem:[#allocation0]]
  $region73: #{tpu_custom_call.1} parent=0
    _
  %s8 = ssub.s32 1, %s6
  %s9 = scalar_select 0, %s8, %s6
  $region1: #{tpu_custom_call.1} parent=0
    #allocation2 [shape = 'u8[32768]{0}', space=vmem, size = 0x8000, scoped, tag = 'input window, operand 0, single buffered']
    #allocation3 [shape = 's32[2]{0}', space=sflag, size = 0x8, scoped, tag = 'scoped memory for tpu_custom_call.1']
    #allocation4 [shape = 's32[2]{0}', space=sflag, size = 0x8, scoped, tag = 'scoped memory for tpu_custom_call.1']
    #allocation5 [shape = 'u8[32768]{0}', space=vmem, size = 0x8000, scoped, tag = 'input window, operand 1, single buffered']
    #allocation6 [shape = 's32[1]{0}', space=sflag, size = 0x4, scoped, tag = 'scoped memory for tpu_custom_call.1']
    #allocation7 [shape = 'u8[1048576]{0}', space=vmem, size = 0x100000, scoped, tag = 'input window, operand 2']
    #allocation8 [shape = 'u8[1048576]{0}', space=vmem, size = 0x100000, scoped, tag = 'input window, operand 3']
    #allocation9 [shape = 'u8[2048]{0}', space=vmem, size = 0x800, scoped, tag = 'input window, operand 4']
    #allocation10 [shape = 'u8[16384]{0}', space=vmem, size = 0x4000, scoped, tag = 'output window, operand 0']
    %10 = vsyncpa [#allocation3], 0
    %11 = vsyncpa [#allocation6], 0
    %12 = vsyncpa [#allocation4], 0
    %s13 = scalar_lea.sflag [#allocation4], 1
    %14 = vsyncpa %s13, 0
    loop: start=0, step=1, limit=6
    $region2: #{tpu_custom_call.1} parent=1 // loop_pre_header
      _
    $region3: #{tpu_custom_call.1} parent=1 // loop_header
      %s16 = sphi 0, %s20
      %p17 = scmp.ge.s32.totalorder %s16, 6
      %s24 = sphi 0, %s24
      %s26 = sphi 0, %s24
      %s27 = sphi 0, %s26
      %s41 = sphi 0, %s27
      %s45 = sphi 0, %s45
      %s47 = sphi 0, %s45
      %s48 = sphi 0, %s47
      %s62 = sphi 0, %s48
      %s68 = sphi 0, %s70
      %s71 = sphi 0, %s68
      %s72 = sphi 0, %s71
      %s88 = sphi 0, %s72
      %s94 = sphi 0, %s96
      %s97 = sphi 0, %s94
      %s98 = sphi 0, %s97
      %s114 = sphi 0, %s98
      %s120 = sphi 0, %s122
      %s123 = sphi 0, %s120
      %s124 = sphi 0, %s123
      %s140 = sphi 0, %s124
      %s146 = sphi 0, %s148
      %s149 = sphi 0, %s146
      %s150 = sphi 0, %s149
      %s166 = sphi 0, %s150
    $region4: #{tpu_custom_call.1} parent=1 // loop_header_branch
      %19 = sbr.rel (%p17) target = $region8
    $region5: #{tpu_custom_call.1} parent=1 // loop_body
      %s21 = ssub.s32 %s16, 1
      %s22 = ssub.s32 %s16, 2
      %s23 = sadd.s32 %s16, 1
      %s25 = sadd.s32 %s24, 1
      %p28 = scmp.eq.s32.totalorder %s16, 3
      %p29 = scmp.ne.s32.totalorder %s24, %s26
      %p30 = scmp.eq.s32.totalorder %s16, 0
      %p31 = por %p29, %p30
      %p32 = scmp.ne.s32.totalorder %s24, %s26
      %p33 = scmp.eq.s32.totalorder %s21, 3
      %p34 = por %p32, %p33
      %p35 = scmp.ne.s32.totalorder %s26, %s27
      %p36 = scmp.eq.s32.totalorder %s21, 0
      %p37 = por %p35, %p36
      %p38 = scmp.ne.s32.totalorder %s26, %s27
      %p39 = scmp.eq.s32.totalorder %s22, 3
      %p40 = por %p38, %p39
      %p42 = scmp.ne.s32.totalorder %s27, %s41
      %p43 = scmp.eq.s32.totalorder %s22, 0
      %p44 = por %p42, %p43
      %s46 = sadd.s32 %s45, 1
      %p49 = scmp.eq.s32.totalorder %s16, 3
      %p50 = scmp.ne.s32.totalorder %s45, %s47
      %p51 = scmp.eq.s32.totalorder %s16, 0
      %p52 = por %p50, %p51
      %p53 = scmp.ne.s32.totalorder %s45, %s47
      %p54 = scmp.eq.s32.totalorder %s21, 3
      %p55 = por %p53, %p54
      %p56 = scmp.ne.s32.totalorder %s47, %s48
      %p57 = scmp.eq.s32.totalorder %s21, 0
      %p58 = por %p56, %p57
      %p59 = scmp.ne.s32.totalorder %s47, %s48
      %p60 = scmp.eq.s32.totalorder %s22, 3
      %p61 = por %p59, %p60
      %p63 = scmp.ne.s32.totalorder %s48, %s62
      %p64 = scmp.eq.s32.totalorder %s22, 0
      %p65 = por %p63, %p64
      %s66 = ssub.s32 %s16, %s23
      %p67 = scmp.eq.s32.totalorder %s66, 0
      %s69 = sadd.s32 %s68, 1
      %s70 = scalar_select %p67, %s68, %s69
      %p73 = pneg %p67
      %p74 = scmp.eq.s32.totalorder %s16, 3
      %p75 = por %p73, %p74
      %p76 = scmp.ne.s32.totalorder %s68, %s71
      %p77 = scmp.eq.s32.totalorder %s16, 0
      %p78 = por %p76, %p77
      %p79 = scmp.ne.s32.totalorder %s68, %s71
      %p80 = scmp.eq.s32.totalorder %s21, 3
      %p81 = por %p79, %p80
      %p82 = scmp.ne.s32.totalorder %s71, %s72
      %p83 = scmp.eq.s32.totalorder %s21, 0
      %p84 = por %p82, %p83
      %p85 = scmp.ne.s32.totalorder %s71, %s72
      %p86 = scmp.eq.s32.totalorder %s22, 3
      %p87 = por %p85, %p86
      %p89 = scmp.ne.s32.totalorder %s72, %s88
      %p90 = scmp.eq.s32.totalorder %s22, 0
      %p91 = por %p89, %p90
      %s92 = ssub.s32 %s16, %s23
      %p93 = scmp.eq.s32.totalorder %s92, 0
      %s95 = sadd.s32 %s94, 1
      %s96 = scalar_select %p93, %s94, %s95
      %p99 = pneg %p93
      %p100 = scmp.eq.s32.totalorder %s16, 3
      %p101 = por %p99, %p100
      %p102 = scmp.ne.s32.totalorder %s94, %s97
      %p103 = scmp.eq.s32.totalorder %s16, 0
      %p104 = por %p102, %p103
      %p105 = scmp.ne.s32.totalorder %s94, %s97
      %p106 = scmp.eq.s32.totalorder %s21, 3
      %p107 = por %p105, %p106
      %p108 = scmp.ne.s32.totalorder %s97, %s98
      %p109 = scmp.eq.s32.totalorder %s21, 0
      %p110 = por %p108, %p109
      %p111 = scmp.ne.s32.totalorder %s97, %s98
      %p112 = scmp.eq.s32.totalorder %s22, 3
      %p113 = por %p111, %p112
      %p115 = scmp.ne.s32.totalorder %s98, %s114
      %p116 = scmp.eq.s32.totalorder %s22, 0
      %p117 = por %p115, %p116
      %s118 = ssub.s32 %s16, %s23
      %p119 = scmp.eq.s32.totalorder %s118, 0
      %s121 = sadd.s32 %s120, 1
      %s122 = scalar_select %p119, %s120, %s121
      %p125 = pneg %p119
      %p126 = scmp.eq.s32.totalorder %s16, 3
      %p127 = por %p125, %p126
      %p128 = scmp.ne.s32.totalorder %s120, %s123
      %p129 = scmp.eq.s32.totalorder %s16, 0
      %p130 = por %p128, %p129
      %p131 = scmp.ne.s32.totalorder %s120, %s123
      %p132 = scmp.eq.s32.totalorder %s21, 3
      %p133 = por %p131, %p132
      %p134 = scmp.ne.s32.totalorder %s123, %s124
      %p135 = scmp.eq.s32.totalorder %s21, 0
      %p136 = por %p134, %p135
      %p137 = scmp.ne.s32.totalorder %s123, %s124
      %p138 = scmp.eq.s32.totalorder %s22, 3
      %p139 = por %p137, %p138
      %p141 = scmp.ne.s32.totalorder %s124, %s140
      %p142 = scmp.eq.s32.totalorder %s22, 0
      %p143 = por %p141, %p142
      %s144 = ssub.s32 %s16, %s23
      %p145 = scmp.eq.s32.totalorder %s144, 0
      %s147 = sadd.s32 %s146, 1
      %s148 = scalar_select %p145, %s146, %s147
      %p151 = pneg %p145
      %p152 = scmp.eq.s32.totalorder %s16, 3
      %p153 = por %p151, %p152
      %p154 = scmp.ne.s32.totalorder %s146, %s149
      %p155 = scmp.eq.s32.totalorder %s16, 0
      %p156 = por %p154, %p155
      %p157 = scmp.ne.s32.totalorder %s146, %s149
      %p158 = scmp.eq.s32.totalorder %s21, 3
      %p159 = por %p157, %p158
      %p160 = scmp.ne.s32.totalorder %s149, %s150
      %p161 = scmp.eq.s32.totalorder %s21, 0
      %p162 = por %p160, %p161
      %p163 = scmp.ne.s32.totalorder %s149, %s150
      %p164 = scmp.eq.s32.totalorder %s22, 3
      %p165 = por %p163, %p164
      %p167 = scmp.ne.s32.totalorder %s150, %s166
      %p168 = scmp.eq.s32.totalorder %s22, 0
      %p169 = por %p167, %p168
      %p170 = scmp.le.s32.totalorder 1, %s16
      %p171 = scmp.lt.s32.totalorder %s16, 5
      %p172 = pnand %p170, %p171
      %p173 = pneg %p172
      // Predicated region
      $region9: #{tpu_custom_call.1} parent=5 // pred_check
        _
      $region10: #{tpu_custom_call.1} parent=5 // pred_check_branch
        %175 = sbr.rel (%p172) target = $region12
      $region11: #{tpu_custom_call.1} parent=5 // pred_region
        %s176 = ssub.s32 %s16, 1
        // Predicated region
        $region13: #{tpu_custom_call.1} parent=11 // pred_check
          %p177 = pneg %p37
        $region14: #{tpu_custom_call.1} parent=11 // pred_check_branch
          %179 = sbr.rel (%p177) target = $region16
        $region15: #{tpu_custom_call.1} parent=11 // pred_region
          %s181 = ssub.s32 1024, 1024
          %182 = vsyncadd [#allocation3], %s181
          %s184 = sshll.u32 [#allocation2], 4
          %s185 = int_to_ptr.vmem [resolvable:$true] %s184
          %187 = dma.hbm_to_vmem [thread:$0]  %s0, 1024, %s185, [#allocation3]
        $region16: #{tpu_custom_call.1} parent=11 // pred_fallthru
          _
        // Predicated region
        $region17: #{tpu_custom_call.1} parent=11 // pred_check
          %p188 = pneg %p58
        $region18: #{tpu_custom_call.1} parent=11 // pred_check_branch
          %190 = sbr.rel (%p188) target = $region20
        $region19: #{tpu_custom_call.1} parent=11 // pred_region
          %s192 = ssub.s32 1024, 1024
          %193 = vsyncadd [#allocation6], %s192
          %s195 = sshll.u32 [#allocation5], 4
          %s196 = int_to_ptr.vmem [resolvable:$true] %s195
          %198 = dma.hbm_to_vmem [thread:$0]  %s1, 1024, %s196, [#allocation6]
        $region20: #{tpu_custom_call.1} parent=11 // pred_fallthru
          _
      $region12: #{tpu_custom_call.1} parent=5 // pred_fallthru
        _
      %p199 = scmp.lt.s32.totalorder %s16, 4
      // Predicated region
      $region21: #{tpu_custom_call.1} parent=5 // pred_check
        %p200 = pneg %p199
      $region22: #{tpu_custom_call.1} parent=5 // pred_check_branch
        %202 = sbr.rel (%p200) target = $region24
      $region23: #{tpu_custom_call.1} parent=5 // pred_region
        // Predicated region
        $region25: #{tpu_custom_call.1} parent=23 // pred_check
          %p203 = pneg %p78
        $region26: #{tpu_custom_call.1} parent=23 // pred_check_branch
          %205 = sbr.rel (%p203) target = $region28
        $region27: #{tpu_custom_call.1} parent=23 // pred_region
          %s206 = sand.u32 %s16, 1
          %s207 = scalar_lea.sflag [#allocation3], %s206
          %s208 = sand.u32 %s68, 1
          %s209 = smul.addr %s208, 1024
          %s210 = scalar_lea.vmem [#allocation7], %s209
          %s211 = smul.u32 2, %s16
          %s213 = ssub.s32 16384, 16384
          %214 = vsyncadd %s207, %s213
          %s215 = smul.addr %s211, 64
          %s216 = scalar_lea.hbm %s2, %s215
          %s217 = sshll.u32 %s210, 4
          %s218 = int_to_ptr.vmem [resolvable:$true] %s217
          %223 = dma.hbm_to_vmem [thread:$0]  %s216, 16384, %s218, %s207, 512, 128, 8
        $region28: #{tpu_custom_call.1} parent=23 // pred_fallthru
          _
        // Predicated region
        $region29: #{tpu_custom_call.1} parent=23 // pred_check
          %p224 = pneg %p104
        $region30: #{tpu_custom_call.1} parent=23 // pred_check_branch
          %226 = sbr.rel (%p224) target = $region32
        $region31: #{tpu_custom_call.1} parent=23 // pred_region
          %s227 = sand.u32 %s16, 1
          %s228 = scalar_lea.sflag [#allocation3], %s227
          %s229 = sand.u32 %s94, 1
          %s230 = smul.addr %s229, 1024
          %s231 = scalar_lea.vmem [#allocation8], %s230
          %s232 = smul.u32 2, %s16
          %s234 = ssub.s32 16384, 16384
          %235 = vsyncadd %s228, %s234
          %s236 = smul.addr %s232, 64
          %s237 = scalar_lea.hbm %s3, %s236
          %s238 = sshll.u32 %s231, 4
          %s239 = int_to_ptr.vmem [resolvable:$true] %s238
          %244 = dma.hbm_to_vmem [thread:$0]  %s237, 16384, %s239, %s228, 512, 128, 8
        $region32: #{tpu_custom_call.1} parent=23 // pred_fallthru
          _
        // Predicated region
        $region33: #{tpu_custom_call.1} parent=23 // pred_check
          %p245 = pneg %p130
        $region34: #{tpu_custom_call.1} parent=23 // pred_check_branch
          %247 = sbr.rel (%p245) target = $region36
        $region35: #{tpu_custom_call.1} parent=23 // pred_region
          %s248 = sand.u32 %s16, 1
          %s249 = scalar_lea.sflag [#allocation3], %s248
          %s250 = sand.u32 %s120, 1
          %s251 = smul.addr %s250, 2
          %s252 = scalar_lea.vmem [#allocation9], %s251
          %s253 = smul.u32 2, %s16
          %s255 = ssub.s32 32, 32
          %256 = vsyncadd %s249, %s255
          %s257 = smul.addr %s253, 16
          %s258 = scalar_lea.hbm %s4, %s257
          %s260 = sshll.u32 %s252, 4
          %s261 = int_to_ptr.vmem [resolvable:$true] %s260
          %263 = dma.hbm_to_vmem [thread:$0]  %s258, 32, %s261, %s249
        $region36: #{tpu_custom_call.1} parent=23 // pred_fallthru
          _
      $region24: #{tpu_custom_call.1} parent=5 // pred_fallthru
        _
      %p264 = scmp.le.s32.totalorder 1, %s16
      %p265 = scmp.lt.s32.totalorder %s16, 5
      %p266 = pnand %p264, %p265
      %p267 = pneg %p266
      // Predicated region
      $region37: #{tpu_custom_call.1} parent=5 // pred_check
        _
      $region38: #{tpu_custom_call.1} parent=5 // pred_check_branch
        %269 = sbr.rel (%p266) target = $region40
      $region39: #{tpu_custom_call.1} parent=5 // pred_region
        %s270 = ssub.s32 %s16, 1
        // Predicated region
        $region41: #{tpu_custom_call.1} parent=39 // pred_check
          %p271 = pneg %p37
        $region42: #{tpu_custom_call.1} parent=39 // pred_check_branch
          %273 = sbr.rel (%p271) target = $region44
        $region43: #{tpu_custom_call.1} parent=39 // pred_region
          %274 = dma.done [#allocation3], 1024
        $region44: #{tpu_custom_call.1} parent=39 // pred_fallthru
          _
        // Predicated region
        $region45: #{tpu_custom_call.1} parent=39 // pred_check
          %p275 = pneg %p58
        $region46: #{tpu_custom_call.1} parent=39 // pred_check_branch
          %277 = sbr.rel (%p275) target = $region48
        $region47: #{tpu_custom_call.1} parent=39 // pred_region
          %278 = dma.done [#allocation6], 1024
        $region48: #{tpu_custom_call.1} parent=39 // pred_fallthru
          _
        %s279 = sand.u32 %s21, 1
        %s280 = scalar_lea.sflag [#allocation3], %s279
        %s281 = sand.u32 %s71, 1
        %s282 = smul.addr %s281, 1024
        %s283 = scalar_lea.vmem [#allocation7], %s282
        // Predicated region
        $region49: #{tpu_custom_call.1} parent=39 // pred_check
          %p284 = pneg %p84
        $region50: #{tpu_custom_call.1} parent=39 // pred_check_branch
          %286 = sbr.rel (%p284) target = $region52
        $region51: #{tpu_custom_call.1} parent=39 // pred_region
          %287 = dma.done %s280, 16384
        $region52: #{tpu_custom_call.1} parent=39 // pred_fallthru
          _
        %s288 = sand.u32 %s21, 1
        %s289 = scalar_lea.sflag [#allocation3], %s288
        %s290 = sand.u32 %s97, 1
        %s291 = smul.addr %s290, 1024
        %s292 = scalar_lea.vmem [#allocation8], %s291
        // Predicated region
        $region53: #{tpu_custom_call.1} parent=39 // pred_check
          %p293 = pneg %p110
        $region54: #{tpu_custom_call.1} parent=39 // pred_check_branch
          %295 = sbr.rel (%p293) target = $region56
        $region55: #{tpu_custom_call.1} parent=39 // pred_region
          %296 = dma.done %s289, 16384
        $region56: #{tpu_custom_call.1} parent=39 // pred_fallthru
          _
        %s297 = sand.u32 %s21, 1
        %s298 = scalar_lea.sflag [#allocation3], %s297
        %s299 = sand.u32 %s123, 1
        %s300 = smul.addr %s299, 2
        %s301 = scalar_lea.vmem [#allocation9], %s300
        // Predicated region
        $region57: #{tpu_custom_call.1} parent=39 // pred_check
          %p302 = pneg %p136
        $region58: #{tpu_custom_call.1} parent=39 // pred_check_branch
          %304 = sbr.rel (%p302) target = $region60
        $region59: #{tpu_custom_call.1} parent=39 // pred_region
          %305 = dma.done %s298, 32
        $region60: #{tpu_custom_call.1} parent=39 // pred_fallthru
          _
        %p306 = pneg %p37
        %p307 = pneg %p34
        %p308 = pneg %p58
        %p309 = pneg %p55
        %s310 = sand.u32 %s21, 1
        %s311 = scalar_lea.sflag [#allocation3], %s310
        %s312 = sand.u32 %s71, 1
        %s313 = smul.addr %s312, 1024
        %s314 = scalar_lea.vmem [#allocation7], %s313
        %p315 = pneg %p84
        %p316 = pneg %p81
        %s317 = sand.u32 %s21, 1
        %s318 = scalar_lea.sflag [#allocation3], %s317
        %s319 = sand.u32 %s97, 1
        %s320 = smul.addr %s319, 1024
        %s321 = scalar_lea.vmem [#allocation8], %s320
        %p322 = pneg %p110
        %p323 = pneg %p107
        %s324 = sand.u32 %s21, 1
        %s325 = scalar_lea.sflag [#allocation3], %s324
        %s326 = sand.u32 %s123, 1
        %s327 = smul.addr %s326, 2
        %s328 = scalar_lea.vmem [#allocation9], %s327
        %p329 = pneg %p136
        %p330 = pneg %p133
        %p331 = pneg %p162
        %p332 = pneg %p159
        %s333 = sand.u32 %s149, 1
        %s334 = scalar_lea.sflag [#allocation4], %s333
        %s335 = sand.u32 %s149, 1
        %s336 = smul.addr %s335, 16
        %s337 = scalar_lea.vmem [#allocation10], %s336
        %s338 = smul.u32 2, %s21
        %s339 = smul.u32 2, %s21
        %s340 = smul.u32 2, %s21
        %s341 = smul.u32 2, %s21
        %v342 = vld [vmem:[#allocation2] sm:$0xff]
        %v343 = vld [vmem:[#allocation2 + $0x8] sm:$0xff]
        %v344 = vld [vmem:[#allocation2 + $0x10] sm:$0xff]
        %v345 = vld [vmem:[#allocation2 + $0x18] sm:$0xff]
        %v346 = vld [vmem:[#allocation2 + $0x20] sm:$0xff]
        %v347 = vld [vmem:[#allocation2 + $0x28] sm:$0xff]
        %v348 = vld [vmem:[#allocation2 + $0x30] sm:$0xff]
        %v349 = vld [vmem:[#allocation2 + $0x38] sm:$0xff]
        %v350 = vpack.c.bf16 %v342, %v342
        %v351 = vpack.c.bf16 %v343, %v343
        %v352 = vpack.c.bf16 %v344, %v344
        %v353 = vpack.c.bf16 %v345, %v345
        %v354 = vpack.c.bf16 %v346, %v346
        %v355 = vpack.c.bf16 %v347, %v347
        %v356 = vpack.c.bf16 %v348, %v348
        %v357 = vpack.c.bf16 %v349, %v349
        %v358 = vld [vmem:[#allocation5] sm:$0xff]
        %v359 = vld [vmem:[#allocation5 + $0x8] sm:$0xff]
        %v360 = vld [vmem:[#allocation5 + $0x10] sm:$0xff]
        %v361 = vld [vmem:[#allocation5 + $0x18] sm:$0xff]
        %v362 = vld [vmem:[#allocation5 + $0x20] sm:$0xff]
        %v363 = vld [vmem:[#allocation5 + $0x28] sm:$0xff]
        %v364 = vld [vmem:[#allocation5 + $0x30] sm:$0xff]
        %v365 = vld [vmem:[#allocation5 + $0x38] sm:$0xff]
        %v366 = vpack.c.bf16 %v358, %v358
        %v367 = vpack.c.bf16 %v359, %v359
        %v368 = vpack.c.bf16 %v360, %v360
        %v369 = vpack.c.bf16 %v361, %v361
        %v370 = vpack.c.bf16 %v362, %v362
        %v371 = vpack.c.bf16 %v363, %v363
        %v372 = vpack.c.bf16 %v364, %v364
        %v373 = vpack.c.bf16 %v365, %v365
        %v374 = vld [vmem:[%s283] sm:$0xff]
        %v375 = vld [vmem:[%s283 + $0x8] sm:$0xff]
        %v376 = vld [vmem:[%s283 + $0x10] sm:$0xff]
        %v377 = vld [vmem:[%s283 + $0x18] sm:$0xff]
        %v378 = vld [vmem:[%s283 + $0x20] sm:$0xff]
        %v379 = vld [vmem:[%s283 + $0x28] sm:$0xff]
        %v380 = vld [vmem:[%s283 + $0x30] sm:$0xff]
        %v381 = vld [vmem:[%s283 + $0x38] sm:$0xff]
        %v382 = vld [vmem:[%s283 + $0x40] sm:$0xff]
        %v383 = vld [vmem:[%s283 + $0x48] sm:$0xff]
        %v384 = vld [vmem:[%s283 + $0x50] sm:$0xff]
        %v385 = vld [vmem:[%s283 + $0x58] sm:$0xff]
        %v386 = vld [vmem:[%s283 + $0x60] sm:$0xff]
        %v387 = vld [vmem:[%s283 + $0x68] sm:$0xff]
        %v388 = vld [vmem:[%s283 + $0x70] sm:$0xff]
        %v389 = vld [vmem:[%s283 + $0x78] sm:$0xff]
        %v390 = vld [vmem:[%s283 + $0x80] sm:$0xff]
        %v391 = vld [vmem:[%s283 + $0x88] sm:$0xff]
        %v392 = vld [vmem:[%s283 + $0x90] sm:$0xff]
        %v393 = vld [vmem:[%s283 + $0x98] sm:$0xff]
        %v394 = vld [vmem:[%s283 + $0xa0] sm:$0xff]
        %v395 = vld [vmem:[%s283 + $0xa8] sm:$0xff]
        %v396 = vld [vmem:[%s283 + $0xb0] sm:$0xff]
        %v397 = vld [vmem:[%s283 + $0xb8] sm:$0xff]
        %v398 = vld [vmem:[%s283 + $0xc0] sm:$0xff]
        %v399 = vld [vmem:[%s283 + $0xc8] sm:$0xff]
        %v400 = vld [vmem:[%s283 + $0xd0] sm:$0xff]
        %v401 = vld [vmem:[%s283 + $0xd8] sm:$0xff]
        %v402 = vld [vmem:[%s283 + $0xe0] sm:$0xff]
        %v403 = vld [vmem:[%s283 + $0xe8] sm:$0xff]
        %v404 = vld [vmem:[%s283 + $0xf0] sm:$0xff]
        %v405 = vld [vmem:[%s283 + $0xf8] sm:$0xff]
        %v406 = vld [vmem:[%s283 + $0x100] sm:$0xff]
        %v407 = vld [vmem:[%s283 + $0x108] sm:$0xff]
        %v408 = vld [vmem:[%s283 + $0x110] sm:$0xff]
        %v409 = vld [vmem:[%s283 + $0x118] sm:$0xff]
        %v410 = vld [vmem:[%s283 + $0x120] sm:$0xff]
        %v411 = vld [vmem:[%s283 + $0x128] sm:$0xff]
        %v412 = vld [vmem:[%s283 + $0x130] sm:$0xff]
        %v413 = vld [vmem:[%s283 + $0x138] sm:$0xff]
        %v414 = vld [vmem:[%s283 + $0x140] sm:$0xff]
        %v415 = vld [vmem:[%s283 + $0x148] sm:$0xff]
        %v416 = vld [vmem:[%s283 + $0x150] sm:$0xff]
        %v417 = vld [vmem:[%s283 + $0x158] sm:$0xff]
        %v418 = vld [vmem:[%s283 + $0x160] sm:$0xff]
        %v419 = vld [vmem:[%s283 + $0x168] sm:$0xff]
        %v420 = vld [vmem:[%s283 + $0x170] sm:$0xff]
        %v421 = vld [vmem:[%s283 + $0x178] sm:$0xff]
        %v422 = vld [vmem:[%s283 + $0x180] sm:$0xff]
        %v423 = vld [vmem:[%s283 + $0x188] sm:$0xff]
        %v424 = vld [vmem:[%s283 + $0x190] sm:$0xff]
        %v425 = vld [vmem:[%s283 + $0x198] sm:$0xff]
        %v426 = vld [vmem:[%s283 + $0x1a0] sm:$0xff]
        %v427 = vld [vmem:[%s283 + $0x1a8] sm:$0xff]
        %v428 = vld [vmem:[%s283 + $0x1b0] sm:$0xff]
        %v429 = vld [vmem:[%s283 + $0x1b8] sm:$0xff]
        %v430 = vld [vmem:[%s283 + $0x1c0] sm:$0xff]
        %v431 = vld [vmem:[%s283 + $0x1c8] sm:$0xff]
        %v432 = vld [vmem:[%s283 + $0x1d0] sm:$0xff]
        %v433 = vld [vmem:[%s283 + $0x1d8] sm:$0xff]
        %v434 = vld [vmem:[%s283 + $0x1e0] sm:$0xff]
        %v435 = vld [vmem:[%s283 + $0x1e8] sm:$0xff]
        %v436 = vld [vmem:[%s283 + $0x1f0] sm:$0xff]
        %v437 = vld [vmem:[%s283 + $0x1f8] sm:$0xff]
        %v438 = vld [vmem:[%s283 + $0x200] sm:$0xff]
        %v439 = vld [vmem:[%s283 + $0x208] sm:$0xff]
        %v440 = vld [vmem:[%s283 + $0x210] sm:$0xff]
        %v441 = vld [vmem:[%s283 + $0x218] sm:$0xff]
        %v442 = vld [vmem:[%s283 + $0x220] sm:$0xff]
        %v443 = vld [vmem:[%s283 + $0x228] sm:$0xff]
        %v444 = vld [vmem:[%s283 + $0x230] sm:$0xff]
        %v445 = vld [vmem:[%s283 + $0x238] sm:$0xff]
        %v446 = vld [vmem:[%s283 + $0x240] sm:$0xff]
        %v447 = vld [vmem:[%s283 + $0x248] sm:$0xff]
        %v448 = vld [vmem:[%s283 + $0x250] sm:$0xff]
        %v449 = vld [vmem:[%s283 + $0x258] sm:$0xff]
        %v450 = vld [vmem:[%s283 + $0x260] sm:$0xff]
        %v451 = vld [vmem:[%s283 + $0x268] sm:$0xff]
        %v452 = vld [vmem:[%s283 + $0x270] sm:$0xff]
        %v453 = vld [vmem:[%s283 + $0x278] sm:$0xff]
        %v454 = vld [vmem:[%s283 + $0x280] sm:$0xff]
        %v455 = vld [vmem:[%s283 + $0x288] sm:$0xff]
        %v456 = vld [vmem:[%s283 + $0x290] sm:$0xff]
        %v457 = vld [vmem:[%s283 + $0x298] sm:$0xff]
        %v458 = vld [vmem:[%s283 + $0x2a0] sm:$0xff]
        %v459 = vld [vmem:[%s283 + $0x2a8] sm:$0xff]
        %v460 = vld [vmem:[%s283 + $0x2b0] sm:$0xff]
        %v461 = vld [vmem:[%s283 + $0x2b8] sm:$0xff]
        %v462 = vld [vmem:[%s283 + $0x2c0] sm:$0xff]
        %v463 = vld [vmem:[%s283 + $0x2c8] sm:$0xff]
        %v464 = vld [vmem:[%s283 + $0x2d0] sm:$0xff]
        %v465 = vld [vmem:[%s283 + $0x2d8] sm:$0xff]
        %v466 = vld [vmem:[%s283 + $0x2e0] sm:$0xff]
        %v467 = vld [vmem:[%s283 + $0x2e8] sm:$0xff]
        %v468 = vld [vmem:[%s283 + $0x2f0] sm:$0xff]
        %v469 = vld [vmem:[%s283 + $0x2f8] sm:$0xff]
        %v470 = vld [vmem:[%s283 + $0x300] sm:$0xff]
        %v471 = vld [vmem:[%s283 + $0x308] sm:$0xff]
        %v472 = vld [vmem:[%s283 + $0x310] sm:$0xff]
        %v473 = vld [vmem:[%s283 + $0x318] sm:$0xff]
        %v474 = vld [vmem:[%s283 + $0x320] sm:$0xff]
        %v475 = vld [vmem:[%s283 + $0x328] sm:$0xff]
        %v476 = vld [vmem:[%s283 + $0x330] sm:$0xff]
        %v477 = vld [vmem:[%s283 + $0x338] sm:$0xff]
        %v478 = vld [vmem:[%s283 + $0x340] sm:$0xff]
        %v479 = vld [vmem:[%s283 + $0x348] sm:$0xff]
        %v480 = vld [vmem:[%s283 + $0x350] sm:$0xff]
        %v481 = vld [vmem:[%s283 + $0x358] sm:$0xff]
        %v482 = vld [vmem:[%s283 + $0x360] sm:$0xff]
        %v483 = vld [vmem:[%s283 + $0x368] sm:$0xff]
        %v484 = vld [vmem:[%s283 + $0x370] sm:$0xff]
        %v485 = vld [vmem:[%s283 + $0x378] sm:$0xff]
        %v486 = vld [vmem:[%s283 + $0x380] sm:$0xff]
        %v487 = vld [vmem:[%s283 + $0x388] sm:$0xff]
        %v488 = vld [vmem:[%s283 + $0x390] sm:$0xff]
        %v489 = vld [vmem:[%s283 + $0x398] sm:$0xff]
        %v490 = vld [vmem:[%s283 + $0x3a0] sm:$0xff]
        %v491 = vld [vmem:[%s283 + $0x3a8] sm:$0xff]
        %v492 = vld [vmem:[%s283 + $0x3b0] sm:$0xff]
        %v493 = vld [vmem:[%s283 + $0x3b8] sm:$0xff]
        %v494 = vld [vmem:[%s283 + $0x3c0] sm:$0xff]
        %v495 = vld [vmem:[%s283 + $0x3c8] sm:$0xff]
        %v496 = vld [vmem:[%s283 + $0x3d0] sm:$0xff]
        %v497 = vld [vmem:[%s283 + $0x3d8] sm:$0xff]
        %v498 = vld [vmem:[%s283 + $0x3e0] sm:$0xff]
        %v499 = vld [vmem:[%s283 + $0x3e8] sm:$0xff]
        %v500 = vld [vmem:[%s283 + $0x3f0] sm:$0xff]
        %v501 = vld [vmem:[%s283 + $0x3f8] sm:$0xff]
        %v502 = vld [vmem:[%s292] sm:$0xff]
        %v503 = vld [vmem:[%s292 + $0x8] sm:$0xff]
        %v504 = vld [vmem:[%s292 + $0x10] sm:$0xff]
        %v505 = vld [vmem:[%s292 + $0x18] sm:$0xff]
        %v506 = vld [vmem:[%s292 + $0x20] sm:$0xff]
        %v507 = vld [vmem:[%s292 + $0x28] sm:$0xff]
        %v508 = vld [vmem:[%s292 + $0x30] sm:$0xff]
        %v509 = vld [vmem:[%s292 + $0x38] sm:$0xff]
        %v510 = vld [vmem:[%s292 + $0x40] sm:$0xff]
        %v511 = vld [vmem:[%s292 + $0x48] sm:$0xff]
        %v512 = vld [vmem:[%s292 + $0x50] sm:$0xff]
        %v513 = vld [vmem:[%s292 + $0x58] sm:$0xff]
        %v514 = vld [vmem:[%s292 + $0x60] sm:$0xff]
        %v515 = vld [vmem:[%s292 + $0x68] sm:$0xff]
        %v516 = vld [vmem:[%s292 + $0x70] sm:$0xff]
        %v517 = vld [vmem:[%s292 + $0x78] sm:$0xff]
        %v518 = vld [vmem:[%s292 + $0x80] sm:$0xff]
        %v519 = vld [vmem:[%s292 + $0x88] sm:$0xff]
        %v520 = vld [vmem:[%s292 + $0x90] sm:$0xff]
        %v521 = vld [vmem:[%s292 + $0x98] sm:$0xff]
        %v522 = vld [vmem:[%s292 + $0xa0] sm:$0xff]
        %v523 = vld [vmem:[%s292 + $0xa8] sm:$0xff]
        %v524 = vld [vmem:[%s292 + $0xb0] sm:$0xff]
        %v525 = vld [vmem:[%s292 + $0xb8] sm:$0xff]
        %v526 = vld [vmem:[%s292 + $0xc0] sm:$0xff]
        %v527 = vld [vmem:[%s292 + $0xc8] sm:$0xff]
        %v528 = vld [vmem:[%s292 + $0xd0] sm:$0xff]
        %v529 = vld [vmem:[%s292 + $0xd8] sm:$0xff]
        %v530 = vld [vmem:[%s292 + $0xe0] sm:$0xff]
        %v531 = vld [vmem:[%s292 + $0xe8] sm:$0xff]
        %v532 = vld [vmem:[%s292 + $0xf0] sm:$0xff]
        %v533 = vld [vmem:[%s292 + $0xf8] sm:$0xff]
        %v534 = vld [vmem:[%s292 + $0x100] sm:$0xff]
        %v535 = vld [vmem:[%s292 + $0x108] sm:$0xff]
        %v536 = vld [vmem:[%s292 + $0x110] sm:$0xff]
        %v537 = vld [vmem:[%s292 + $0x118] sm:$0xff]
        %v538 = vld [vmem:[%s292 + $0x120] sm:$0xff]
        %v539 = vld [vmem:[%s292 + $0x128] sm:$0xff]
        %v540 = vld [vmem:[%s292 + $0x130] sm:$0xff]
        %v541 = vld [vmem:[%s292 + $0x138] sm:$0xff]
        %v542 = vld [vmem:[%s292 + $0x140] sm:$0xff]
        %v543 = vld [vmem:[%s292 + $0x148] sm:$0xff]
        %v544 = vld [vmem:[%s292 + $0x150] sm:$0xff]
        %v545 = vld [vmem:[%s292 + $0x158] sm:$0xff]
        %v546 = vld [vmem:[%s292 + $0x160] sm:$0xff]
        %v547 = vld [vmem:[%s292 + $0x168] sm:$0xff]
        %v548 = vld [vmem:[%s292 + $0x170] sm:$0xff]
        %v549 = vld [vmem:[%s292 + $0x178] sm:$0xff]
        %v550 = vld [vmem:[%s292 + $0x180] sm:$0xff]
        %v551 = vld [vmem:[%s292 + $0x188] sm:$0xff]
        %v552 = vld [vmem:[%s292 + $0x190] sm:$0xff]
        %v553 = vld [vmem:[%s292 + $0x198] sm:$0xff]
        %v554 = vld [vmem:[%s292 + $0x1a0] sm:$0xff]
        %v555 = vld [vmem:[%s292 + $0x1a8] sm:$0xff]
        %v556 = vld [vmem:[%s292 + $0x1b0] sm:$0xff]
        %v557 = vld [vmem:[%s292 + $0x1b8] sm:$0xff]
        %v558 = vld [vmem:[%s292 + $0x1c0] sm:$0xff]
        %v559 = vld [vmem:[%s292 + $0x1c8] sm:$0xff]
        %v560 = vld [vmem:[%s292 + $0x1d0] sm:$0xff]
        %v561 = vld [vmem:[%s292 + $0x1d8] sm:$0xff]
        %v562 = vld [vmem:[%s292 + $0x1e0] sm:$0xff]
        %v563 = vld [vmem:[%s292 + $0x1e8] sm:$0xff]
        %v564 = vld [vmem:[%s292 + $0x1f0] sm:$0xff]
        %v565 = vld [vmem:[%s292 + $0x1f8] sm:$0xff]
        %v566 = vld [vmem:[%s292 + $0x200] sm:$0xff]
        %v567 = vld [vmem:[%s292 + $0x208] sm:$0xff]
        %v568 = vld [vmem:[%s292 + $0x210] sm:$0xff]
        %v569 = vld [vmem:[%s292 + $0x218] sm:$0xff]
        %v570 = vld [vmem:[%s292 + $0x220] sm:$0xff]
        %v571 = vld [vmem:[%s292 + $0x228] sm:$0xff]
        %v572 = vld [vmem:[%s292 + $0x230] sm:$0xff]
        %v573 = vld [vmem:[%s292 + $0x238] sm:$0xff]
        %v574 = vld [vmem:[%s292 + $0x240] sm:$0xff]
        %v575 = vld [vmem:[%s292 + $0x248] sm:$0xff]
        %v576 = vld [vmem:[%s292 + $0x250] sm:$0xff]
        %v577 = vld [vmem:[%s292 + $0x258] sm:$0xff]
        %v578 = vld [vmem:[%s292 + $0x260] sm:$0xff]
        %v579 = vld [vmem:[%s292 + $0x268] sm:$0xff]
        %v580 = vld [vmem:[%s292 + $0x270] sm:$0xff]
        %v581 = vld [vmem:[%s292 + $0x278] sm:$0xff]
        %v582 = vld [vmem:[%s292 + $0x280] sm:$0xff]
        %v583 = vld [vmem:[%s292 + $0x288] sm:$0xff]
        %v584 = vld [vmem:[%s292 + $0x290] sm:$0xff]
        %v585 = vld [vmem:[%s292 + $0x298] sm:$0xff]
        %v586 = vld [vmem:[%s292 + $0x2a0] sm:$0xff]
        %v587 = vld [vmem:[%s292 + $0x2a8] sm:$0xff]
        %v588 = vld [vmem:[%s292 + $0x2b0] sm:$0xff]
        %v589 = vld [vmem:[%s292 + $0x2b8] sm:$0xff]
        %v590 = vld [vmem:[%s292 + $0x2c0] sm:$0xff]
        %v591 = vld [vmem:[%s292 + $0x2c8] sm:$0xff]
        %v592 = vld [vmem:[%s292 + $0x2d0] sm:$0xff]
        %v593 = vld [vmem:[%s292 + $0x2d8] sm:$0xff]
        %v594 = vld [vmem:[%s292 + $0x2e0] sm:$0xff]
        %v595 = vld [vmem:[%s292 + $0x2e8] sm:$0xff]
        %v596 = vld [vmem:[%s292 + $0x2f0] sm:$0xff]
        %v597 = vld [vmem:[%s292 + $0x2f8] sm:$0xff]
        %v598 = vld [vmem:[%s292 + $0x300] sm:$0xff]
        %v599 = vld [vmem:[%s292 + $0x308] sm:$0xff]
        %v600 = vld [vmem:[%s292 + $0x310] sm:$0xff]
        %v601 = vld [vmem:[%s292 + $0x318] sm:$0xff]
        %v602 = vld [vmem:[%s292 + $0x320] sm:$0xff]
        %v603 = vld [vmem:[%s292 + $0x328] sm:$0xff]
        %v604 = vld [vmem:[%s292 + $0x330] sm:$0xff]
        %v605 = vld [vmem:[%s292 + $0x338] sm:$0xff]
        %v606 = vld [vmem:[%s292 + $0x340] sm:$0xff]
        %v607 = vld [vmem:[%s292 + $0x348] sm:$0xff]
        %v608 = vld [vmem:[%s292 + $0x350] sm:$0xff]
        %v609 = vld [vmem:[%s292 + $0x358] sm:$0xff]
        %v610 = vld [vmem:[%s292 + $0x360] sm:$0xff]
        %v611 = vld [vmem:[%s292 + $0x368] sm:$0xff]
        %v612 = vld [vmem:[%s292 + $0x370] sm:$0xff]
        %v613 = vld [vmem:[%s292 + $0x378] sm:$0xff]
        %v614 = vld [vmem:[%s292 + $0x380] sm:$0xff]
        %v615 = vld [vmem:[%s292 + $0x388] sm:$0xff]
        %v616 = vld [vmem:[%s292 + $0x390] sm:$0xff]
        %v617 = vld [vmem:[%s292 + $0x398] sm:$0xff]
        %v618 = vld [vmem:[%s292 + $0x3a0] sm:$0xff]
        %v619 = vld [vmem:[%s292 + $0x3a8] sm:$0xff]
        %v620 = vld [vmem:[%s292 + $0x3b0] sm:$0xff]
        %v621 = vld [vmem:[%s292 + $0x3b8] sm:$0xff]
        %v622 = vld [vmem:[%s292 + $0x3c0] sm:$0xff]
        %v623 = vld [vmem:[%s292 + $0x3c8] sm:$0xff]
        %v624 = vld [vmem:[%s292 + $0x3d0] sm:$0xff]
        %v625 = vld [vmem:[%s292 + $0x3d8] sm:$0xff]
        %v626 = vld [vmem:[%s292 + $0x3e0] sm:$0xff]
        %v627 = vld [vmem:[%s292 + $0x3e8] sm:$0xff]
        %v628 = vld [vmem:[%s292 + $0x3f0] sm:$0xff]
        %v629 = vld [vmem:[%s292 + $0x3f8] sm:$0xff]
        %v758 = vunpack.c.l.b16 %v502
        %v759 = vunpack.c.h.b16 %v502
        %v760 = vunpack.c.l.b16 %v503
        %v761 = vunpack.c.h.b16 %v503
        %v762 = vunpack.c.l.b16 %v504
        %v763 = vunpack.c.h.b16 %v504
        %v764 = vunpack.c.l.b16 %v505
        %v765 = vunpack.c.h.b16 %v505
        %v766 = vunpack.c.l.b16 %v506
        %v767 = vunpack.c.h.b16 %v506
        %v768 = vunpack.c.l.b16 %v507
        %v769 = vunpack.c.h.b16 %v507
        %v770 = vunpack.c.l.b16 %v508
        %v771 = vunpack.c.h.b16 %v508
        %v772 = vunpack.c.l.b16 %v509
        %v773 = vunpack.c.h.b16 %v509
        %v774 = vunpack.c.l.b16 %v510
        %v775 = vunpack.c.h.b16 %v510
        %v776 = vunpack.c.l.b16 %v511
        %v777 = vunpack.c.h.b16 %v511
        %v778 = vunpack.c.l.b16 %v512
        %v779 = vunpack.c.h.b16 %v512
        %v780 = vunpack.c.l.b16 %v513
        %v781 = vunpack.c.h.b16 %v513
        %v782 = vunpack.c.l.b16 %v514
        %v783 = vunpack.c.h.b16 %v514
        %v784 = vunpack.c.l.b16 %v515
        %v785 = vunpack.c.h.b16 %v515
        %v786 = vunpack.c.l.b16 %v516
        %v787 = vunpack.c.h.b16 %v516
        %v788 = vunpack.c.l.b16 %v517
        %v789 = vunpack.c.h.b16 %v517
        %v790 = vunpack.c.l.b16 %v518
        %v791 = vunpack.c.h.b16 %v518
        %v792 = vunpack.c.l.b16 %v519
        %v793 = vunpack.c.h.b16 %v519
        %v794 = vunpack.c.l.b16 %v520
        %v795 = vunpack.c.h.b16 %v520
        %v796 = vunpack.c.l.b16 %v521
        %v797 = vunpack.c.h.b16 %v521
        %v798 = vunpack.c.l.b16 %v522
        %v799 = vunpack.c.h.b16 %v522
        %v800 = vunpack.c.l.b16 %v523
        %v801 = vunpack.c.h.b16 %v523
        %v802 = vunpack.c.l.b16 %v524
        %v803 = vunpack.c.h.b16 %v524
        %v804 = vunpack.c.l.b16 %v525
        %v805 = vunpack.c.h.b16 %v525
        %v806 = vunpack.c.l.b16 %v526
        %v807 = vunpack.c.h.b16 %v526
        %v808 = vunpack.c.l.b16 %v527
        %v809 = vunpack.c.h.b16 %v527
        %v810 = vunpack.c.l.b16 %v528
        %v811 = vunpack.c.h.b16 %v528
        %v812 = vunpack.c.l.b16 %v529
        %v813 = vunpack.c.h.b16 %v529
        %v814 = vunpack.c.l.b16 %v530
        %v815 = vunpack.c.h.b16 %v530
        %v816 = vunpack.c.l.b16 %v531
        %v817 = vunpack.c.h.b16 %v531
        %v818 = vunpack.c.l.b16 %v532
        %v819 = vunpack.c.h.b16 %v532
        %v820 = vunpack.c.l.b16 %v533
        %v821 = vunpack.c.h.b16 %v533
        %v822 = vunpack.c.l.b16 %v534
        %v823 = vunpack.c.h.b16 %v534
        %v824 = vunpack.c.l.b16 %v535
        %v825 = vunpack.c.h.b16 %v535
        %v826 = vunpack.c.l.b16 %v536
        %v827 = vunpack.c.h.b16 %v536
        %v828 = vunpack.c.l.b16 %v537
        %v829 = vunpack.c.h.b16 %v537
        %v830 = vunpack.c.l.b16 %v538
        %v831 = vunpack.c.h.b16 %v538
        %v832 = vunpack.c.l.b16 %v539
        %v833 = vunpack.c.h.b16 %v539
        %v834 = vunpack.c.l.b16 %v540
        %v835 = vunpack.c.h.b16 %v540
        %v836 = vunpack.c.l.b16 %v541
        %v837 = vunpack.c.h.b16 %v541
        %v838 = vunpack.c.l.b16 %v542
        %v839 = vunpack.c.h.b16 %v542
        %v840 = vunpack.c.l.b16 %v543
        %v841 = vunpack.c.h.b16 %v543
        %v842 = vunpack.c.l.b16 %v544
        %v843 = vunpack.c.h.b16 %v544
        %v844 = vunpack.c.l.b16 %v545
        %v845 = vunpack.c.h.b16 %v545
        %v846 = vunpack.c.l.b16 %v546
        %v847 = vunpack.c.h.b16 %v546
        %v848 = vunpack.c.l.b16 %v547
        %v849 = vunpack.c.h.b16 %v547
        %v850 = vunpack.c.l.b16 %v548
        %v851 = vunpack.c.h.b16 %v548
        %v852 = vunpack.c.l.b16 %v549
        %v853 = vunpack.c.h.b16 %v549
        %v854 = vunpack.c.l.b16 %v550
        %v855 = vunpack.c.h.b16 %v550
        %v856 = vunpack.c.l.b16 %v551
        %v857 = vunpack.c.h.b16 %v551
        %v858 = vunpack.c.l.b16 %v552
        %v859 = vunpack.c.h.b16 %v552
        %v860 = vunpack.c.l.b16 %v553
        %v861 = vunpack.c.h.b16 %v553
        %v862 = vunpack.c.l.b16 %v554
        %v863 = vunpack.c.h.b16 %v554
        %v864 = vunpack.c.l.b16 %v555
        %v865 = vunpack.c.h.b16 %v555
        %v866 = vunpack.c.l.b16 %v556
        %v867 = vunpack.c.h.b16 %v556
        %v868 = vunpack.c.l.b16 %v557
        %v869 = vunpack.c.h.b16 %v557
        %v870 = vunpack.c.l.b16 %v558
        %v871 = vunpack.c.h.b16 %v558
        %v872 = vunpack.c.l.b16 %v559
        %v873 = vunpack.c.h.b16 %v559
        %v874 = vunpack.c.l.b16 %v560
        %v875 = vunpack.c.h.b16 %v560
        %v876 = vunpack.c.l.b16 %v561
        %v877 = vunpack.c.h.b16 %v561
        %v878 = vunpack.c.l.b16 %v562
        %v879 = vunpack.c.h.b16 %v562
        %v880 = vunpack.c.l.b16 %v563
        %v881 = vunpack.c.h.b16 %v563
        %v882 = vunpack.c.l.b16 %v564
        %v883 = vunpack.c.h.b16 %v564
        %v884 = vunpack.c.l.b16 %v565
        %v885 = vunpack.c.h.b16 %v565
        %v886 = vunpack.c.l.b16 %v566
        %v887 = vunpack.c.h.b16 %v566
        %v888 = vunpack.c.l.b16 %v567
        %v889 = vunpack.c.h.b16 %v567
        %v890 = vunpack.c.l.b16 %v568
        %v891 = vunpack.c.h.b16 %v568
        %v892 = vunpack.c.l.b16 %v569
        %v893 = vunpack.c.h.b16 %v569
        %v894 = vunpack.c.l.b16 %v570
        %v895 = vunpack.c.h.b16 %v570
        %v896 = vunpack.c.l.b16 %v571
        %v897 = vunpack.c.h.b16 %v571
        %v898 = vunpack.c.l.b16 %v572
        %v899 = vunpack.c.h.b16 %v572
        %v900 = vunpack.c.l.b16 %v573
        %v901 = vunpack.c.h.b16 %v573
        %v902 = vunpack.c.l.b16 %v574
        %v903 = vunpack.c.h.b16 %v574
        %v904 = vunpack.c.l.b16 %v575
        %v905 = vunpack.c.h.b16 %v575
        %v906 = vunpack.c.l.b16 %v576
        %v907 = vunpack.c.h.b16 %v576
        %v908 = vunpack.c.l.b16 %v577
        %v909 = vunpack.c.h.b16 %v577
        %v910 = vunpack.c.l.b16 %v578
        %v911 = vunpack.c.h.b16 %v578
        %v912 = vunpack.c.l.b16 %v579
        %v913 = vunpack.c.h.b16 %v579
        %v914 = vunpack.c.l.b16 %v580
        %v915 = vunpack.c.h.b16 %v580
        %v916 = vunpack.c.l.b16 %v581
        %v917 = vunpack.c.h.b16 %v581
        %v918 = vunpack.c.l.b16 %v582
        %v919 = vunpack.c.h.b16 %v582
        %v920 = vunpack.c.l.b16 %v583
        %v921 = vunpack.c.h.b16 %v583
        %v922 = vunpack.c.l.b16 %v584
        %v923 = vunpack.c.h.b16 %v584
        %v924 = vunpack.c.l.b16 %v585
        %v925 = vunpack.c.h.b16 %v585
        %v926 = vunpack.c.l.b16 %v586
        %v927 = vunpack.c.h.b16 %v586
        %v928 = vunpack.c.l.b16 %v587
        %v929 = vunpack.c.h.b16 %v587
        %v930 = vunpack.c.l.b16 %v588
        %v931 = vunpack.c.h.b16 %v588
        %v932 = vunpack.c.l.b16 %v589
        %v933 = vunpack.c.h.b16 %v589
        %v934 = vunpack.c.l.b16 %v590
        %v935 = vunpack.c.h.b16 %v590
        %v936 = vunpack.c.l.b16 %v591
        %v937 = vunpack.c.h.b16 %v591
        %v938 = vunpack.c.l.b16 %v592
        %v939 = vunpack.c.h.b16 %v592
        %v940 = vunpack.c.l.b16 %v593
        %v941 = vunpack.c.h.b16 %v593
        %v942 = vunpack.c.l.b16 %v594
        %v943 = vunpack.c.h.b16 %v594
        %v944 = vunpack.c.l.b16 %v595
        %v945 = vunpack.c.h.b16 %v595
        %v946 = vunpack.c.l.b16 %v596
        %v947 = vunpack.c.h.b16 %v596
        %v948 = vunpack.c.l.b16 %v597
        %v949 = vunpack.c.h.b16 %v597
        %v950 = vunpack.c.l.b16 %v598
        %v951 = vunpack.c.h.b16 %v598
        %v952 = vunpack.c.l.b16 %v599
        %v953 = vunpack.c.h.b16 %v599
        %v954 = vunpack.c.l.b16 %v600
        %v955 = vunpack.c.h.b16 %v600
        %v956 = vunpack.c.l.b16 %v601
        %v957 = vunpack.c.h.b16 %v601
        %v958 = vunpack.c.l.b16 %v602
        %v959 = vunpack.c.h.b16 %v602
        %v960 = vunpack.c.l.b16 %v603
        %v961 = vunpack.c.h.b16 %v603
        %v962 = vunpack.c.l.b16 %v604
        %v963 = vunpack.c.h.b16 %v604
        %v964 = vunpack.c.l.b16 %v605
        %v965 = vunpack.c.h.b16 %v605
        %v966 = vunpack.c.l.b16 %v606
        %v967 = vunpack.c.h.b16 %v606
        %v968 = vunpack.c.l.b16 %v607
        %v969 = vunpack.c.h.b16 %v607
        %v970 = vunpack.c.l.b16 %v608
        %v971 = vunpack.c.h.b16 %v608
        %v972 = vunpack.c.l.b16 %v609
        %v973 = vunpack.c.h.b16 %v609
        %v974 = vunpack.c.l.b16 %v610
        %v975 = vunpack.c.h.b16 %v610
        %v976 = vunpack.c.l.b16 %v611
        %v977 = vunpack.c.h.b16 %v611
        %v978 = vunpack.c.l.b16 %v612
        %v979 = vunpack.c.h.b16 %v612
        %v980 = vunpack.c.l.b16 %v613
        %v981 = vunpack.c.h.b16 %v613
        %v982 = vunpack.c.l.b16 %v614
        %v983 = vunpack.c.h.b16 %v614
        %v984 = vunpack.c.l.b16 %v615
        %v985 = vunpack.c.h.b16 %v615
        %v986 = vunpack.c.l.b16 %v616
        %v987 = vunpack.c.h.b16 %v616
        %v988 = vunpack.c.l.b16 %v617
        %v989 = vunpack.c.h.b16 %v617
        %v990 = vunpack.c.l.b16 %v618
        %v991 = vunpack.c.h.b16 %v618
        %v992 = vunpack.c.l.b16 %v619
        %v993 = vunpack.c.h.b16 %v619
        %v994 = vunpack.c.l.b16 %v620
        %v995 = vunpack.c.h.b16 %v620
        %v996 = vunpack.c.l.b16 %v621
        %v997 = vunpack.c.h.b16 %v621
        %v998 = vunpack.c.l.b16 %v622
        %v999 = vunpack.c.h.b16 %v622
        %v1000 = vunpack.c.l.b16 %v623
        %v1001 = vunpack.c.h.b16 %v623
        %v1002 = vunpack.c.l.b16 %v624
        %v1003 = vunpack.c.h.b16 %v624
        %v1004 = vunpack.c.l.b16 %v625
        %v1005 = vunpack.c.h.b16 %v625
        %v1006 = vunpack.c.l.b16 %v626
        %v1007 = vunpack.c.h.b16 %v626
        %v1008 = vunpack.c.l.b16 %v627
        %v1009 = vunpack.c.h.b16 %v627
        %v1010 = vunpack.c.l.b16 %v628
        %v1011 = vunpack.c.h.b16 %v628
        %v1012 = vunpack.c.l.b16 %v629
        %v1013 = vunpack.c.h.b16 %v629
        %v1014 = vpack.c.b16 %v760, %v758
        %v1015 = vpack.c.b16 %v761, %v759
        %v1016 = vpack.c.b16 %v764, %v762
        %v1017 = vpack.c.b16 %v765, %v763
        %v1018 = vpack.c.b16 %v768, %v766
        %v1019 = vpack.c.b16 %v769, %v767
        %v1020 = vpack.c.b16 %v772, %v770
        %v1021 = vpack.c.b16 %v773, %v771
        %v1022 = vpack.c.b16 %v776, %v774
        %v1023 = vpack.c.b16 %v777, %v775
        %v1024 = vpack.c.b16 %v780, %v778
        %v1025 = vpack.c.b16 %v781, %v779
        %v1026 = vpack.c.b16 %v784, %v782
        %v1027 = vpack.c.b16 %v785, %v783
        %v1028 = vpack.c.b16 %v788, %v786
        %v1029 = vpack.c.b16 %v789, %v787
        %v1030 = vpack.c.b16 %v792, %v790
        %v1031 = vpack.c.b16 %v793, %v791
        %v1032 = vpack.c.b16 %v796, %v794
        %v1033 = vpack.c.b16 %v797, %v795
        %v1034 = vpack.c.b16 %v800, %v798
        %v1035 = vpack.c.b16 %v801, %v799
        %v1036 = vpack.c.b16 %v804, %v802
        %v1037 = vpack.c.b16 %v805, %v803
        %v1038 = vpack.c.b16 %v808, %v806
        %v1039 = vpack.c.b16 %v809, %v807
        %v1040 = vpack.c.b16 %v812, %v810
        %v1041 = vpack.c.b16 %v813, %v811
        %v1042 = vpack.c.b16 %v816, %v814
        %v1043 = vpack.c.b16 %v817, %v815
        %v1044 = vpack.c.b16 %v820, %v818
        %v1045 = vpack.c.b16 %v821, %v819
        %v1046 = vpack.c.b16 %v824, %v822
        %v1047 = vpack.c.b16 %v825, %v823
        %v1048 = vpack.c.b16 %v828, %v826
        %v1049 = vpack.c.b16 %v829, %v827
        %v1050 = vpack.c.b16 %v832, %v830
        %v1051 = vpack.c.b16 %v833, %v831
        %v1052 = vpack.c.b16 %v836, %v834
        %v1053 = vpack.c.b16 %v837, %v835
        %v1054 = vpack.c.b16 %v840, %v838
        %v1055 = vpack.c.b16 %v841, %v839
        %v1056 = vpack.c.b16 %v844, %v842
        %v1057 = vpack.c.b16 %v845, %v843
        %v1058 = vpack.c.b16 %v848, %v846
        %v1059 = vpack.c.b16 %v849, %v847
        %v1060 = vpack.c.b16 %v852, %v850
        %v1061 = vpack.c.b16 %v853, %v851
        %v1062 = vpack.c.b16 %v856, %v854
        %v1063 = vpack.c.b16 %v857, %v855
        %v1064 = vpack.c.b16 %v860, %v858
        %v1065 = vpack.c.b16 %v861, %v859
        %v1066 = vpack.c.b16 %v864, %v862
        %v1067 = vpack.c.b16 %v865, %v863
        %v1068 = vpack.c.b16 %v868, %v866
        %v1069 = vpack.c.b16 %v869, %v867
        %v1070 = vpack.c.b16 %v872, %v870
        %v1071 = vpack.c.b16 %v873, %v871
        %v1072 = vpack.c.b16 %v876, %v874
        %v1073 = vpack.c.b16 %v877, %v875
        %v1074 = vpack.c.b16 %v880, %v878
        %v1075 = vpack.c.b16 %v881, %v879
        %v1076 = vpack.c.b16 %v884, %v882
        %v1077 = vpack.c.b16 %v885, %v883
        %v1078 = vpack.c.b16 %v888, %v886
        %v1079 = vpack.c.b16 %v889, %v887
        %v1080 = vpack.c.b16 %v892, %v890
        %v1081 = vpack.c.b16 %v893, %v891
        %v1082 = vpack.c.b16 %v896, %v894
        %v1083 = vpack.c.b16 %v897, %v895
        %v1084 = vpack.c.b16 %v900, %v898
        %v1085 = vpack.c.b16 %v901, %v899
        %v1086 = vpack.c.b16 %v904, %v902
        %v1087 = vpack.c.b16 %v905, %v903
        %v1088 = vpack.c.b16 %v908, %v906
        %v1089 = vpack.c.b16 %v909, %v907
        %v1090 = vpack.c.b16 %v912, %v910
        %v1091 = vpack.c.b16 %v913, %v911
        %v1092 = vpack.c.b16 %v916, %v914
        %v1093 = vpack.c.b16 %v917, %v915
        %v1094 = vpack.c.b16 %v920, %v918
        %v1095 = vpack.c.b16 %v921, %v919
        %v1096 = vpack.c.b16 %v924, %v922
        %v1097 = vpack.c.b16 %v925, %v923
        %v1098 = vpack.c.b16 %v928, %v926
        %v1099 = vpack.c.b16 %v929, %v927
        %v1100 = vpack.c.b16 %v932, %v930
        %v1101 = vpack.c.b16 %v933, %v931
        %v1102 = vpack.c.b16 %v936, %v934
        %v1103 = vpack.c.b16 %v937, %v935
        %v1104 = vpack.c.b16 %v940, %v938
        %v1105 = vpack.c.b16 %v941, %v939
        %v1106 = vpack.c.b16 %v944, %v942
        %v1107 = vpack.c.b16 %v945, %v943
        %v1108 = vpack.c.b16 %v948, %v946
        %v1109 = vpack.c.b16 %v949, %v947
        %v1110 = vpack.c.b16 %v952, %v950
        %v1111 = vpack.c.b16 %v953, %v951
        %v1112 = vpack.c.b16 %v956, %v954
        %v1113 = vpack.c.b16 %v957, %v955
        %v1114 = vpack.c.b16 %v960, %v958
        %v1115 = vpack.c.b16 %v961, %v959
        %v1116 = vpack.c.b16 %v964, %v962
        %v1117 = vpack.c.b16 %v965, %v963
        %v1118 = vpack.c.b16 %v968, %v966
        %v1119 = vpack.c.b16 %v969, %v967
        %v1120 = vpack.c.b16 %v972, %v970
        %v1121 = vpack.c.b16 %v973, %v971
        %v1122 = vpack.c.b16 %v976, %v974
        %v1123 = vpack.c.b16 %v977, %v975
        %v1124 = vpack.c.b16 %v980, %v978
        %v1125 = vpack.c.b16 %v981, %v979
        %v1126 = vpack.c.b16 %v984, %v982
        %v1127 = vpack.c.b16 %v985, %v983
        %v1128 = vpack.c.b16 %v988, %v986
        %v1129 = vpack.c.b16 %v989, %v987
        %v1130 = vpack.c.b16 %v992, %v990
        %v1131 = vpack.c.b16 %v993, %v991
        %v1132 = vpack.c.b16 %v996, %v994
        %v1133 = vpack.c.b16 %v997, %v995
        %v1134 = vpack.c.b16 %v1000, %v998
        %v1135 = vpack.c.b16 %v1001, %v999
        %v1136 = vpack.c.b16 %v1004, %v1002
        %v1137 = vpack.c.b16 %v1005, %v1003
        %v1138 = vpack.c.b16 %v1008, %v1006
        %v1139 = vpack.c.b16 %v1009, %v1007
        %v1140 = vpack.c.b16 %v1012, %v1010
        %v1141 = vpack.c.b16 %v1013, %v1011
        %1270 = vmatprep.subr.bf16.mxu0 %v1029
        %1271 = vmatpush1.bf16.msra.mxu0 %v1028
        %1272 = vmatprep.subr.bf16.mxu0 %v1027
        %1273 = vmatpush1.bf16.msra.mxu0 %v1026
        %1274 = vmatprep.subr.bf16.mxu0 %v1025
        %1275 = vmatpush1.bf16.msra.mxu0 %v1024
        %1276 = vmatprep.subr.bf16.mxu0 %v1023
        %1277 = vmatpush1.bf16.msra.mxu0 %v1022
        %1278 = vmatprep.subr.bf16.mxu0 %v1021
        %1279 = vmatpush1.bf16.msra.mxu0 %v1020
        %1280 = vmatprep.subr.bf16.mxu0 %v1019
        %1281 = vmatpush1.bf16.msra.mxu0 %v1018
        %1282 = vmatprep.subr.bf16.mxu0 %v1017
        %1283 = vmatpush1.bf16.msra.mxu0 %v1016
        %1284 = vmatprep.subr.bf16.mxu0 %v1015
        %1285 = vmatpush1.bf16.msra.mxu0 %v1014
        %1286 = vmatprep.subr.bf16.mxu0 %v1045
        %1287 = vmatpush2.bf16.msra.mxu0 %v1044
        %1288 = vmatprep.subr.bf16.mxu0 %v1043
        %1289 = vmatpush2.bf16.msra.mxu0 %v1042
        %1290 = vmatprep.subr.bf16.mxu0 %v1041
        %1291 = vmatpush2.bf16.msra.mxu0 %v1040
        %1292 = vmatprep.subr.bf16.mxu0 %v1039
        %1293 = vmatpush2.bf16.msra.mxu0 %v1038
        %1294 = vmatprep.subr.bf16.mxu0 %v1037
        %1295 = vmatpush2.bf16.msra.mxu0 %v1036
        %1296 = vmatprep.subr.bf16.mxu0 %v1035
        %1297 = vmatpush2.bf16.msra.mxu0 %v1034
        %1298 = vmatprep.subr.bf16.mxu0 %v1033
        %1299 = vmatpush2.bf16.msra.mxu0 %v1032
        %1300 = vmatprep.subr.bf16.mxu0 %v1031
        %1301 = vmatpush2.bf16.msra.mxu0 %v1030
        %1302 = vmatprep.mubr.bf16.mxu0 %v367
        %1303 = vmatmul.mubr.bf16.gmra.mxu0 %v366
        %v1304 = vpop.f32.mrf.mxu0
        %v1305 = vadd.f32 0.0, %v1304
        %v1306 = vpop.f32.mrf.mxu0
        %v1307 = vadd.f32 0.0, %v1306
        %v1308 = vpop.f32.mrf.mxu0
        %v1309 = vpop.f32.mrf.mxu0
        %1310 = vdwg.mxu0
        %1311 = vmatprep.subr.bf16.mxu0 %v1061
        %1312 = vmatpush1.bf16.msra.mxu0 %v1060
        %1313 = vmatprep.subr.bf16.mxu0 %v1059
        %1314 = vmatpush1.bf16.msra.mxu0 %v1058
        %1315 = vmatprep.subr.bf16.mxu0 %v1057
        %1316 = vmatpush1.bf16.msra.mxu0 %v1056
        %1317 = vmatprep.subr.bf16.mxu0 %v1055
        %1318 = vmatpush1.bf16.msra.mxu0 %v1054
        %1319 = vmatprep.subr.bf16.mxu0 %v1053
        %1320 = vmatpush1.bf16.msra.mxu0 %v1052
        %1321 = vmatprep.subr.bf16.mxu0 %v1051
        %1322 = vmatpush1.bf16.msra.mxu0 %v1050
        %1323 = vmatprep.subr.bf16.mxu0 %v1049
        %1324 = vmatpush1.bf16.msra.mxu0 %v1048
        %1325 = vmatprep.subr.bf16.mxu0 %v1047
        %1326 = vmatpush1.bf16.msra.mxu0 %v1046
        %1327 = vmatprep.subr.bf16.mxu0 %v1077
        %1328 = vmatpush2.bf16.msra.mxu0 %v1076
        %1329 = vmatprep.subr.bf16.mxu0 %v1075
        %1330 = vmatpush2.bf16.msra.mxu0 %v1074
        %1331 = vmatprep.subr.bf16.mxu0 %v1073
        %1332 = vmatpush2.bf16.msra.mxu0 %v1072
        %1333 = vmatprep.subr.bf16.mxu0 %v1071
        %1334 = vmatpush2.bf16.msra.mxu0 %v1070
        %1335 = vmatprep.subr.bf16.mxu0 %v1069
        %1336 = vmatpush2.bf16.msra.mxu0 %v1068
        %1337 = vmatprep.subr.bf16.mxu0 %v1067
        %1338 = vmatpush2.bf16.msra.mxu0 %v1066
        %1339 = vmatprep.subr.bf16.mxu0 %v1065
        %1340 = vmatpush2.bf16.msra.mxu0 %v1064
        %1341 = vmatprep.subr.bf16.mxu0 %v1063
        %1342 = vmatpush2.bf16.msra.mxu0 %v1062
        %1343 = vmatprep.mubr.bf16.mxu0 %v369
        %1344 = vmatmul.mubr.bf16.gmra.mxu0 %v368
        %v1345 = vpop.f32.mrf.mxu0
        %v1346 = vadd.f32 %v1305, %v1345
        %v1347 = vpop.f32.mrf.mxu0
        %v1348 = vadd.f32 %v1307, %v1347
        %v1349 = vpop.f32.mrf.mxu0
        %v1350 = vpop.f32.mrf.mxu0
        %1351 = vdwg.mxu0
        %1352 = vmatprep.subr.bf16.mxu0 %v1093
        %1353 = vmatpush1.bf16.msra.mxu0 %v1092
        %1354 = vmatprep.subr.bf16.mxu0 %v1091
        %1355 = vmatpush1.bf16.msra.mxu0 %v1090
        %1356 = vmatprep.subr.bf16.mxu0 %v1089
        %1357 = vmatpush1.bf16.msra.mxu0 %v1088
        %1358 = vmatprep.subr.bf16.mxu0 %v1087
        %1359 = vmatpush1.bf16.msra.mxu0 %v1086
        %1360 = vmatprep.subr.bf16.mxu0 %v1085
        %1361 = vmatpush1.bf16.msra.mxu0 %v1084
        %1362 = vmatprep.subr.bf16.mxu0 %v1083
        %1363 = vmatpush1.bf16.msra.mxu0 %v1082
        %1364 = vmatprep.subr.bf16.mxu0 %v1081
        %1365 = vmatpush1.bf16.msra.mxu0 %v1080
        %1366 = vmatprep.subr.bf16.mxu0 %v1079
        %1367 = vmatpush1.bf16.msra.mxu0 %v1078
        %1368 = vmatprep.subr.bf16.mxu0 %v1109
        %1369 = vmatpush2.bf16.msra.mxu0 %v1108
        %1370 = vmatprep.subr.bf16.mxu0 %v1107
        %1371 = vmatpush2.bf16.msra.mxu0 %v1106
        %1372 = vmatprep.subr.bf16.mxu0 %v1105
        %1373 = vmatpush2.bf16.msra.mxu0 %v1104
        %1374 = vmatprep.subr.bf16.mxu0 %v1103
        %1375 = vmatpush2.bf16.msra.mxu0 %v1102
        %1376 = vmatprep.subr.bf16.mxu0 %v1101
        %1377 = vmatpush2.bf16.msra.mxu0 %v1100
        %1378 = vmatprep.subr.bf16.mxu0 %v1099
        %1379 = vmatpush2.bf16.msra.mxu0 %v1098
        %1380 = vmatprep.subr.bf16.mxu0 %v1097
        %1381 = vmatpush2.bf16.msra.mxu0 %v1096
        %1382 = vmatprep.subr.bf16.mxu0 %v1095
        %1383 = vmatpush2.bf16.msra.mxu0 %v1094
        %1384 = vmatprep.mubr.bf16.mxu0 %v371
        %1385 = vmatmul.mubr.bf16.gmra.mxu0 %v370
        %v1386 = vpop.f32.mrf.mxu0
        %v1387 = vadd.f32 %v1346, %v1386
        %v1388 = vpop.f32.mrf.mxu0
        %v1389 = vadd.f32 %v1348, %v1388
        %v1390 = vpop.f32.mrf.mxu0
        %v1391 = vpop.f32.mrf.mxu0
        %1392 = vdwg.mxu0
        %1393 = vmatprep.subr.bf16.mxu0 %v1125
        %1394 = vmatpush1.bf16.msra.mxu0 %v1124
        %1395 = vmatprep.subr.bf16.mxu0 %v1123
        %1396 = vmatpush1.bf16.msra.mxu0 %v1122
        %1397 = vmatprep.subr.bf16.mxu0 %v1121
        %1398 = vmatpush1.bf16.msra.mxu0 %v1120
        %1399 = vmatprep.subr.bf16.mxu0 %v1119
        %1400 = vmatpush1.bf16.msra.mxu0 %v1118
        %1401 = vmatprep.subr.bf16.mxu0 %v1117
        %1402 = vmatpush1.bf16.msra.mxu0 %v1116
        %1403 = vmatprep.subr.bf16.mxu0 %v1115
        %1404 = vmatpush1.bf16.msra.mxu0 %v1114
        %1405 = vmatprep.subr.bf16.mxu0 %v1113
        %1406 = vmatpush1.bf16.msra.mxu0 %v1112
        %1407 = vmatprep.subr.bf16.mxu0 %v1111
        %1408 = vmatpush1.bf16.msra.mxu0 %v1110
        %1409 = vmatprep.subr.bf16.mxu0 %v1141
        %1410 = vmatpush2.bf16.msra.mxu0 %v1140
        %1411 = vmatprep.subr.bf16.mxu0 %v1139
        %1412 = vmatpush2.bf16.msra.mxu0 %v1138
        %1413 = vmatprep.subr.bf16.mxu0 %v1137
        %1414 = vmatpush2.bf16.msra.mxu0 %v1136
        %1415 = vmatprep.subr.bf16.mxu0 %v1135
        %1416 = vmatpush2.bf16.msra.mxu0 %v1134
        %1417 = vmatprep.subr.bf16.mxu0 %v1133
        %1418 = vmatpush2.bf16.msra.mxu0 %v1132
        %1419 = vmatprep.subr.bf16.mxu0 %v1131
        %1420 = vmatpush2.bf16.msra.mxu0 %v1130
        %1421 = vmatprep.subr.bf16.mxu0 %v1129
        %1422 = vmatpush2.bf16.msra.mxu0 %v1128
        %1423 = vmatprep.subr.bf16.mxu0 %v1127
        %1424 = vmatpush2.bf16.msra.mxu0 %v1126
        %1425 = vmatprep.mubr.bf16.mxu0 %v373
        %1426 = vmatmul.mubr.bf16.gmra.mxu0 %v372
        %v1427 = vpop.f32.mrf.mxu0
        %v1428 = vadd.f32 %v1387, %v1427
        %v1429 = vpop.f32.mrf.mxu0
        %v1430 = vadd.f32 %v1389, %v1429
        %v1431 = vpop.f32.mrf.mxu0
        %v1432 = vpop.f32.mrf.mxu0
        %1433 = vdwg.mxu0
        %v1562 = vunpack.c.l.b16 %v374
        %v1563 = vunpack.c.h.b16 %v374
        %v1564 = vunpack.c.l.b16 %v375
        %v1565 = vunpack.c.h.b16 %v375
        %v1566 = vunpack.c.l.b16 %v376
        %v1567 = vunpack.c.h.b16 %v376
        %v1568 = vunpack.c.l.b16 %v377
        %v1569 = vunpack.c.h.b16 %v377
        %v1570 = vunpack.c.l.b16 %v378
        %v1571 = vunpack.c.h.b16 %v378
        %v1572 = vunpack.c.l.b16 %v379
        %v1573 = vunpack.c.h.b16 %v379
        %v1574 = vunpack.c.l.b16 %v380
        %v1575 = vunpack.c.h.b16 %v380
        %v1576 = vunpack.c.l.b16 %v381
        %v1577 = vunpack.c.h.b16 %v381
        %v1578 = vunpack.c.l.b16 %v382
        %v1579 = vunpack.c.h.b16 %v382
        %v1580 = vunpack.c.l.b16 %v383
        %v1581 = vunpack.c.h.b16 %v383
        %v1582 = vunpack.c.l.b16 %v384
        %v1583 = vunpack.c.h.b16 %v384
        %v1584 = vunpack.c.l.b16 %v385
        %v1585 = vunpack.c.h.b16 %v385
        %v1586 = vunpack.c.l.b16 %v386
        %v1587 = vunpack.c.h.b16 %v386
        %v1588 = vunpack.c.l.b16 %v387
        %v1589 = vunpack.c.h.b16 %v387
        %v1590 = vunpack.c.l.b16 %v388
        %v1591 = vunpack.c.h.b16 %v388
        %v1592 = vunpack.c.l.b16 %v389
        %v1593 = vunpack.c.h.b16 %v389
        %v1594 = vunpack.c.l.b16 %v390
        %v1595 = vunpack.c.h.b16 %v390
        %v1596 = vunpack.c.l.b16 %v391
        %v1597 = vunpack.c.h.b16 %v391
        %v1598 = vunpack.c.l.b16 %v392
        %v1599 = vunpack.c.h.b16 %v392
        %v1600 = vunpack.c.l.b16 %v393
        %v1601 = vunpack.c.h.b16 %v393
        %v1602 = vunpack.c.l.b16 %v394
        %v1603 = vunpack.c.h.b16 %v394
        %v1604 = vunpack.c.l.b16 %v395
        %v1605 = vunpack.c.h.b16 %v395
        %v1606 = vunpack.c.l.b16 %v396
        %v1607 = vunpack.c.h.b16 %v396
        %v1608 = vunpack.c.l.b16 %v397
        %v1609 = vunpack.c.h.b16 %v397
        %v1610 = vunpack.c.l.b16 %v398
        %v1611 = vunpack.c.h.b16 %v398
        %v1612 = vunpack.c.l.b16 %v399
        %v1613 = vunpack.c.h.b16 %v399
        %v1614 = vunpack.c.l.b16 %v400
        %v1615 = vunpack.c.h.b16 %v400
        %v1616 = vunpack.c.l.b16 %v401
        %v1617 = vunpack.c.h.b16 %v401
        %v1618 = vunpack.c.l.b16 %v402
        %v1619 = vunpack.c.h.b16 %v402
        %v1620 = vunpack.c.l.b16 %v403
        %v1621 = vunpack.c.h.b16 %v403
        %v1622 = vunpack.c.l.b16 %v404
        %v1623 = vunpack.c.h.b16 %v404
        %v1624 = vunpack.c.l.b16 %v405
        %v1625 = vunpack.c.h.b16 %v405
        %v1626 = vunpack.c.l.b16 %v406
        %v1627 = vunpack.c.h.b16 %v406
        %v1628 = vunpack.c.l.b16 %v407
        %v1629 = vunpack.c.h.b16 %v407
        %v1630 = vunpack.c.l.b16 %v408
        %v1631 = vunpack.c.h.b16 %v408
        %v1632 = vunpack.c.l.b16 %v409
        %v1633 = vunpack.c.h.b16 %v409
        %v1634 = vunpack.c.l.b16 %v410
        %v1635 = vunpack.c.h.b16 %v410
        %v1636 = vunpack.c.l.b16 %v411
        %v1637 = vunpack.c.h.b16 %v411
        %v1638 = vunpack.c.l.b16 %v412
        %v1639 = vunpack.c.h.b16 %v412
        %v1640 = vunpack.c.l.b16 %v413
        %v1641 = vunpack.c.h.b16 %v413
        %v1642 = vunpack.c.l.b16 %v414
        %v1643 = vunpack.c.h.b16 %v414
        %v1644 = vunpack.c.l.b16 %v415
        %v1645 = vunpack.c.h.b16 %v415
        %v1646 = vunpack.c.l.b16 %v416
        %v1647 = vunpack.c.h.b16 %v416
        %v1648 = vunpack.c.l.b16 %v417
        %v1649 = vunpack.c.h.b16 %v417
        %v1650 = vunpack.c.l.b16 %v418
        %v1651 = vunpack.c.h.b16 %v418
        %v1652 = vunpack.c.l.b16 %v419
        %v1653 = vunpack.c.h.b16 %v419
        %v1654 = vunpack.c.l.b16 %v420
        %v1655 = vunpack.c.h.b16 %v420
        %v1656 = vunpack.c.l.b16 %v421
        %v1657 = vunpack.c.h.b16 %v421
        %v1658 = vunpack.c.l.b16 %v422
        %v1659 = vunpack.c.h.b16 %v422
        %v1660 = vunpack.c.l.b16 %v423
        %v1661 = vunpack.c.h.b16 %v423
        %v1662 = vunpack.c.l.b16 %v424
        %v1663 = vunpack.c.h.b16 %v424
        %v1664 = vunpack.c.l.b16 %v425
        %v1665 = vunpack.c.h.b16 %v425
        %v1666 = vunpack.c.l.b16 %v426
        %v1667 = vunpack.c.h.b16 %v426
        %v1668 = vunpack.c.l.b16 %v427
        %v1669 = vunpack.c.h.b16 %v427
        %v1670 = vunpack.c.l.b16 %v428
        %v1671 = vunpack.c.h.b16 %v428
        %v1672 = vunpack.c.l.b16 %v429
        %v1673 = vunpack.c.h.b16 %v429
        %v1674 = vunpack.c.l.b16 %v430
        %v1675 = vunpack.c.h.b16 %v430
        %v1676 = vunpack.c.l.b16 %v431
        %v1677 = vunpack.c.h.b16 %v431
        %v1678 = vunpack.c.l.b16 %v432
        %v1679 = vunpack.c.h.b16 %v432
        %v1680 = vunpack.c.l.b16 %v433
        %v1681 = vunpack.c.h.b16 %v433
        %v1682 = vunpack.c.l.b16 %v434
        %v1683 = vunpack.c.h.b16 %v434
        %v1684 = vunpack.c.l.b16 %v435
        %v1685 = vunpack.c.h.b16 %v435
        %v1686 = vunpack.c.l.b16 %v436
        %v1687 = vunpack.c.h.b16 %v436
        %v1688 = vunpack.c.l.b16 %v437
        %v1689 = vunpack.c.h.b16 %v437
        %v1690 = vunpack.c.l.b16 %v438
        %v1691 = vunpack.c.h.b16 %v438
        %v1692 = vunpack.c.l.b16 %v439
        %v1693 = vunpack.c.h.b16 %v439
        %v1694 = vunpack.c.l.b16 %v440
        %v1695 = vunpack.c.h.b16 %v440
        %v1696 = vunpack.c.l.b16 %v441
        %v1697 = vunpack.c.h.b16 %v441
        %v1698 = vunpack.c.l.b16 %v442
        %v1699 = vunpack.c.h.b16 %v442
        %v1700 = vunpack.c.l.b16 %v443
        %v1701 = vunpack.c.h.b16 %v443
        %v1702 = vunpack.c.l.b16 %v444
        %v1703 = vunpack.c.h.b16 %v444
        %v1704 = vunpack.c.l.b16 %v445
        %v1705 = vunpack.c.h.b16 %v445
        %v1706 = vunpack.c.l.b16 %v446
        %v1707 = vunpack.c.h.b16 %v446
        %v1708 = vunpack.c.l.b16 %v447
        %v1709 = vunpack.c.h.b16 %v447
        %v1710 = vunpack.c.l.b16 %v448
        %v1711 = vunpack.c.h.b16 %v448
        %v1712 = vunpack.c.l.b16 %v449
        %v1713 = vunpack.c.h.b16 %v449
        %v1714 = vunpack.c.l.b16 %v450
        %v1715 = vunpack.c.h.b16 %v450
        %v1716 = vunpack.c.l.b16 %v451
        %v1717 = vunpack.c.h.b16 %v451
        %v1718 = vunpack.c.l.b16 %v452
        %v1719 = vunpack.c.h.b16 %v452
        %v1720 = vunpack.c.l.b16 %v453
        %v1721 = vunpack.c.h.b16 %v453
        %v1722 = vunpack.c.l.b16 %v454
        %v1723 = vunpack.c.h.b16 %v454
        %v1724 = vunpack.c.l.b16 %v455
        %v1725 = vunpack.c.h.b16 %v455
        %v1726 = vunpack.c.l.b16 %v456
        %v1727 = vunpack.c.h.b16 %v456
        %v1728 = vunpack.c.l.b16 %v457
        %v1729 = vunpack.c.h.b16 %v457
        %v1730 = vunpack.c.l.b16 %v458
        %v1731 = vunpack.c.h.b16 %v458
        %v1732 = vunpack.c.l.b16 %v459
        %v1733 = vunpack.c.h.b16 %v459
        %v1734 = vunpack.c.l.b16 %v460
        %v1735 = vunpack.c.h.b16 %v460
        %v1736 = vunpack.c.l.b16 %v461
        %v1737 = vunpack.c.h.b16 %v461
        %v1738 = vunpack.c.l.b16 %v462
        %v1739 = vunpack.c.h.b16 %v462
        %v1740 = vunpack.c.l.b16 %v463
        %v1741 = vunpack.c.h.b16 %v463
        %v1742 = vunpack.c.l.b16 %v464
        %v1743 = vunpack.c.h.b16 %v464
        %v1744 = vunpack.c.l.b16 %v465
        %v1745 = vunpack.c.h.b16 %v465
        %v1746 = vunpack.c.l.b16 %v466
        %v1747 = vunpack.c.h.b16 %v466
        %v1748 = vunpack.c.l.b16 %v467
        %v1749 = vunpack.c.h.b16 %v467
        %v1750 = vunpack.c.l.b16 %v468
        %v1751 = vunpack.c.h.b16 %v468
        %v1752 = vunpack.c.l.b16 %v469
        %v1753 = vunpack.c.h.b16 %v469
        %v1754 = vunpack.c.l.b16 %v470
        %v1755 = vunpack.c.h.b16 %v470
        %v1756 = vunpack.c.l.b16 %v471
        %v1757 = vunpack.c.h.b16 %v471
        %v1758 = vunpack.c.l.b16 %v472
        %v1759 = vunpack.c.h.b16 %v472
        %v1760 = vunpack.c.l.b16 %v473
        %v1761 = vunpack.c.h.b16 %v473
        %v1762 = vunpack.c.l.b16 %v474
        %v1763 = vunpack.c.h.b16 %v474
        %v1764 = vunpack.c.l.b16 %v475
        %v1765 = vunpack.c.h.b16 %v475
        %v1766 = vunpack.c.l.b16 %v476
        %v1767 = vunpack.c.h.b16 %v476
        %v1768 = vunpack.c.l.b16 %v477
        %v1769 = vunpack.c.h.b16 %v477
        %v1770 = vunpack.c.l.b16 %v478
        %v1771 = vunpack.c.h.b16 %v478
        %v1772 = vunpack.c.l.b16 %v479
        %v1773 = vunpack.c.h.b16 %v479
        %v1774 = vunpack.c.l.b16 %v480
        %v1775 = vunpack.c.h.b16 %v480
        %v1776 = vunpack.c.l.b16 %v481
        %v1777 = vunpack.c.h.b16 %v481
        %v1778 = vunpack.c.l.b16 %v482
        %v1779 = vunpack.c.h.b16 %v482
        %v1780 = vunpack.c.l.b16 %v483
        %v1781 = vunpack.c.h.b16 %v483
        %v1782 = vunpack.c.l.b16 %v484
        %v1783 = vunpack.c.h.b16 %v484
        %v1784 = vunpack.c.l.b16 %v485
        %v1785 = vunpack.c.h.b16 %v485
        %v1786 = vunpack.c.l.b16 %v486
        %v1787 = vunpack.c.h.b16 %v486
        %v1788 = vunpack.c.l.b16 %v487
        %v1789 = vunpack.c.h.b16 %v487
        %v1790 = vunpack.c.l.b16 %v488
        %v1791 = vunpack.c.h.b16 %v488
        %v1792 = vunpack.c.l.b16 %v489
        %v1793 = vunpack.c.h.b16 %v489
        %v1794 = vunpack.c.l.b16 %v490
        %v1795 = vunpack.c.h.b16 %v490
        %v1796 = vunpack.c.l.b16 %v491
        %v1797 = vunpack.c.h.b16 %v491
        %v1798 = vunpack.c.l.b16 %v492
        %v1799 = vunpack.c.h.b16 %v492
        %v1800 = vunpack.c.l.b16 %v493
        %v1801 = vunpack.c.h.b16 %v493
        %v1802 = vunpack.c.l.b16 %v494
        %v1803 = vunpack.c.h.b16 %v494
        %v1804 = vunpack.c.l.b16 %v495
        %v1805 = vunpack.c.h.b16 %v495
        %v1806 = vunpack.c.l.b16 %v496
        %v1807 = vunpack.c.h.b16 %v496
        %v1808 = vunpack.c.l.b16 %v497
        %v1809 = vunpack.c.h.b16 %v497
        %v1810 = vunpack.c.l.b16 %v498
        %v1811 = vunpack.c.h.b16 %v498
        %v1812 = vunpack.c.l.b16 %v499
        %v1813 = vunpack.c.h.b16 %v499
        %v1814 = vunpack.c.l.b16 %v500
        %v1815 = vunpack.c.h.b16 %v500
        %v1816 = vunpack.c.l.b16 %v501
        %v1817 = vunpack.c.h.b16 %v501
        %v1818 = vpack.c.b16 %v1564, %v1562
        %v1819 = vpack.c.b16 %v1565, %v1563
        %v1820 = vpack.c.b16 %v1568, %v1566
        %v1821 = vpack.c.b16 %v1569, %v1567
        %v1822 = vpack.c.b16 %v1572, %v1570
        %v1823 = vpack.c.b16 %v1573, %v1571
        %v1824 = vpack.c.b16 %v1576, %v1574
        %v1825 = vpack.c.b16 %v1577, %v1575
        %v1826 = vpack.c.b16 %v1580, %v1578
        %v1827 = vpack.c.b16 %v1581, %v1579
        %v1828 = vpack.c.b16 %v1584, %v1582
        %v1829 = vpack.c.b16 %v1585, %v1583
        %v1830 = vpack.c.b16 %v1588, %v1586
        %v1831 = vpack.c.b16 %v1589, %v1587
        %v1832 = vpack.c.b16 %v1592, %v1590
        %v1833 = vpack.c.b16 %v1593, %v1591
        %v1834 = vpack.c.b16 %v1596, %v1594
        %v1835 = vpack.c.b16 %v1597, %v1595
        %v1836 = vpack.c.b16 %v1600, %v1598
        %v1837 = vpack.c.b16 %v1601, %v1599
        %v1838 = vpack.c.b16 %v1604, %v1602
        %v1839 = vpack.c.b16 %v1605, %v1603
        %v1840 = vpack.c.b16 %v1608, %v1606
        %v1841 = vpack.c.b16 %v1609, %v1607
        %v1842 = vpack.c.b16 %v1612, %v1610
        %v1843 = vpack.c.b16 %v1613, %v1611
        %v1844 = vpack.c.b16 %v1616, %v1614
        %v1845 = vpack.c.b16 %v1617, %v1615
        %v1846 = vpack.c.b16 %v1620, %v1618
        %v1847 = vpack.c.b16 %v1621, %v1619
        %v1848 = vpack.c.b16 %v1624, %v1622
        %v1849 = vpack.c.b16 %v1625, %v1623
        %v1850 = vpack.c.b16 %v1628, %v1626
        %v1851 = vpack.c.b16 %v1629, %v1627
        %v1852 = vpack.c.b16 %v1632, %v1630
        %v1853 = vpack.c.b16 %v1633, %v1631
        %v1854 = vpack.c.b16 %v1636, %v1634
        %v1855 = vpack.c.b16 %v1637, %v1635
        %v1856 = vpack.c.b16 %v1640, %v1638
        %v1857 = vpack.c.b16 %v1641, %v1639
        %v1858 = vpack.c.b16 %v1644, %v1642
        %v1859 = vpack.c.b16 %v1645, %v1643
        %v1860 = vpack.c.b16 %v1648, %v1646
        %v1861 = vpack.c.b16 %v1649, %v1647
        %v1862 = vpack.c.b16 %v1652, %v1650
        %v1863 = vpack.c.b16 %v1653, %v1651
        %v1864 = vpack.c.b16 %v1656, %v1654
        %v1865 = vpack.c.b16 %v1657, %v1655
        %v1866 = vpack.c.b16 %v1660, %v1658
        %v1867 = vpack.c.b16 %v1661, %v1659
        %v1868 = vpack.c.b16 %v1664, %v1662
        %v1869 = vpack.c.b16 %v1665, %v1663
        %v1870 = vpack.c.b16 %v1668, %v1666
        %v1871 = vpack.c.b16 %v1669, %v1667
        %v1872 = vpack.c.b16 %v1672, %v1670
        %v1873 = vpack.c.b16 %v1673, %v1671
        %v1874 = vpack.c.b16 %v1676, %v1674
        %v1875 = vpack.c.b16 %v1677, %v1675
        %v1876 = vpack.c.b16 %v1680, %v1678
        %v1877 = vpack.c.b16 %v1681, %v1679
        %v1878 = vpack.c.b16 %v1684, %v1682
        %v1879 = vpack.c.b16 %v1685, %v1683
        %v1880 = vpack.c.b16 %v1688, %v1686
        %v1881 = vpack.c.b16 %v1689, %v1687
        %v1882 = vpack.c.b16 %v1692, %v1690
        %v1883 = vpack.c.b16 %v1693, %v1691
        %v1884 = vpack.c.b16 %v1696, %v1694
        %v1885 = vpack.c.b16 %v1697, %v1695
        %v1886 = vpack.c.b16 %v1700, %v1698
        %v1887 = vpack.c.b16 %v1701, %v1699
        %v1888 = vpack.c.b16 %v1704, %v1702
        %v1889 = vpack.c.b16 %v1705, %v1703
        %v1890 = vpack.c.b16 %v1708, %v1706
        %v1891 = vpack.c.b16 %v1709, %v1707
        %v1892 = vpack.c.b16 %v1712, %v1710
        %v1893 = vpack.c.b16 %v1713, %v1711
        %v1894 = vpack.c.b16 %v1716, %v1714
        %v1895 = vpack.c.b16 %v1717, %v1715
        %v1896 = vpack.c.b16 %v1720, %v1718
        %v1897 = vpack.c.b16 %v1721, %v1719
        %v1898 = vpack.c.b16 %v1724, %v1722
        %v1899 = vpack.c.b16 %v1725, %v1723
        %v1900 = vpack.c.b16 %v1728, %v1726
        %v1901 = vpack.c.b16 %v1729, %v1727
        %v1902 = vpack.c.b16 %v1732, %v1730
        %v1903 = vpack.c.b16 %v1733, %v1731
        %v1904 = vpack.c.b16 %v1736, %v1734
        %v1905 = vpack.c.b16 %v1737, %v1735
        %v1906 = vpack.c.b16 %v1740, %v1738
        %v1907 = vpack.c.b16 %v1741, %v1739
        %v1908 = vpack.c.b16 %v1744, %v1742
        %v1909 = vpack.c.b16 %v1745, %v1743
        %v1910 = vpack.c.b16 %v1748, %v1746
        %v1911 = vpack.c.b16 %v1749, %v1747
        %v1912 = vpack.c.b16 %v1752, %v1750
        %v1913 = vpack.c.b16 %v1753, %v1751
        %v1914 = vpack.c.b16 %v1756, %v1754
        %v1915 = vpack.c.b16 %v1757, %v1755
        %v1916 = vpack.c.b16 %v1760, %v1758
        %v1917 = vpack.c.b16 %v1761, %v1759
        %v1918 = vpack.c.b16 %v1764, %v1762
        %v1919 = vpack.c.b16 %v1765, %v1763
        %v1920 = vpack.c.b16 %v1768, %v1766
        %v1921 = vpack.c.b16 %v1769, %v1767
        %v1922 = vpack.c.b16 %v1772, %v1770
        %v1923 = vpack.c.b16 %v1773, %v1771
        %v1924 = vpack.c.b16 %v1776, %v1774
        %v1925 = vpack.c.b16 %v1777, %v1775
        %v1926 = vpack.c.b16 %v1780, %v1778
        %v1927 = vpack.c.b16 %v1781, %v1779
        %v1928 = vpack.c.b16 %v1784, %v1782
        %v1929 = vpack.c.b16 %v1785, %v1783
        %v1930 = vpack.c.b16 %v1788, %v1786
        %v1931 = vpack.c.b16 %v1789, %v1787
        %v1932 = vpack.c.b16 %v1792, %v1790
        %v1933 = vpack.c.b16 %v1793, %v1791
        %v1934 = vpack.c.b16 %v1796, %v1794
        %v1935 = vpack.c.b16 %v1797, %v1795
        %v1936 = vpack.c.b16 %v1800, %v1798
        %v1937 = vpack.c.b16 %v1801, %v1799
        %v1938 = vpack.c.b16 %v1804, %v1802
        %v1939 = vpack.c.b16 %v1805, %v1803
        %v1940 = vpack.c.b16 %v1808, %v1806
        %v1941 = vpack.c.b16 %v1809, %v1807
        %v1942 = vpack.c.b16 %v1812, %v1810
        %v1943 = vpack.c.b16 %v1813, %v1811
        %v1944 = vpack.c.b16 %v1816, %v1814
        %v1945 = vpack.c.b16 %v1817, %v1815
        %2074 = vmatprep.subr.bf16.mxu0 %v1833
        %2075 = vmatpush1.bf16.msra.mxu0 %v1832
        %2076 = vmatprep.subr.bf16.mxu0 %v1831
        %2077 = vmatpush1.bf16.msra.mxu0 %v1830
        %2078 = vmatprep.subr.bf16.mxu0 %v1829
        %2079 = vmatpush1.bf16.msra.mxu0 %v1828
        %2080 = vmatprep.subr.bf16.mxu0 %v1827
        %2081 = vmatpush1.bf16.msra.mxu0 %v1826
        %2082 = vmatprep.subr.bf16.mxu0 %v1825
        %2083 = vmatpush1.bf16.msra.mxu0 %v1824
        %2084 = vmatprep.subr.bf16.mxu0 %v1823
        %2085 = vmatpush1.bf16.msra.mxu0 %v1822
        %2086 = vmatprep.subr.bf16.mxu0 %v1821
        %2087 = vmatpush1.bf16.msra.mxu0 %v1820
        %2088 = vmatprep.subr.bf16.mxu0 %v1819
        %2089 = vmatpush1.bf16.msra.mxu0 %v1818
        %2090 = vmatprep.subr.bf16.mxu0 %v1849
        %2091 = vmatpush2.bf16.msra.mxu0 %v1848
        %2092 = vmatprep.subr.bf16.mxu0 %v1847
        %2093 = vmatpush2.bf16.msra.mxu0 %v1846
        %2094 = vmatprep.subr.bf16.mxu0 %v1845
        %2095 = vmatpush2.bf16.msra.mxu0 %v1844
        %2096 = vmatprep.subr.bf16.mxu0 %v1843
        %2097 = vmatpush2.bf16.msra.mxu0 %v1842
        %2098 = vmatprep.subr.bf16.mxu0 %v1841
        %2099 = vmatpush2.bf16.msra.mxu0 %v1840
        %2100 = vmatprep.subr.bf16.mxu0 %v1839
        %2101 = vmatpush2.bf16.msra.mxu0 %v1838
        %2102 = vmatprep.subr.bf16.mxu0 %v1837
        %2103 = vmatpush2.bf16.msra.mxu0 %v1836
        %2104 = vmatprep.subr.bf16.mxu0 %v1835
        %2105 = vmatpush2.bf16.msra.mxu0 %v1834
        %2106 = vmatprep.mubr.bf16.mxu0 %v351
        %2107 = vmatmul.mubr.bf16.gmra.mxu0 %v350
        %v2108 = vpop.f32.mrf.mxu0
        %v2109 = vadd.f32 %v1428, %v2108
        %v2110 = vpop.f32.mrf.mxu0
        %v2111 = vadd.f32 %v1430, %v2110
        %v2112 = vpop.f32.mrf.mxu0
        %v2113 = vpop.f32.mrf.mxu0
        %2114 = vdwg.mxu0
        %2115 = vmatprep.subr.bf16.mxu0 %v1865
        %2116 = vmatpush1.bf16.msra.mxu0 %v1864
        %2117 = vmatprep.subr.bf16.mxu0 %v1863
        %2118 = vmatpush1.bf16.msra.mxu0 %v1862
        %2119 = vmatprep.subr.bf16.mxu0 %v1861
        %2120 = vmatpush1.bf16.msra.mxu0 %v1860
        %2121 = vmatprep.subr.bf16.mxu0 %v1859
        %2122 = vmatpush1.bf16.msra.mxu0 %v1858
        %2123 = vmatprep.subr.bf16.mxu0 %v1857
        %2124 = vmatpush1.bf16.msra.mxu0 %v1856
        %2125 = vmatprep.subr.bf16.mxu0 %v1855
        %2126 = vmatpush1.bf16.msra.mxu0 %v1854
        %2127 = vmatprep.subr.bf16.mxu0 %v1853
        %2128 = vmatpush1.bf16.msra.mxu0 %v1852
        %2129 = vmatprep.subr.bf16.mxu0 %v1851
        %2130 = vmatpush1.bf16.msra.mxu0 %v1850
        %2131 = vmatprep.subr.bf16.mxu0 %v1881
        %2132 = vmatpush2.bf16.msra.mxu0 %v1880
        %2133 = vmatprep.subr.bf16.mxu0 %v1879
        %2134 = vmatpush2.bf16.msra.mxu0 %v1878
        %2135 = vmatprep.subr.bf16.mxu0 %v1877
        %2136 = vmatpush2.bf16.msra.mxu0 %v1876
        %2137 = vmatprep.subr.bf16.mxu0 %v1875
        %2138 = vmatpush2.bf16.msra.mxu0 %v1874
        %2139 = vmatprep.subr.bf16.mxu0 %v1873
        %2140 = vmatpush2.bf16.msra.mxu0 %v1872
        %2141 = vmatprep.subr.bf16.mxu0 %v1871
        %2142 = vmatpush2.bf16.msra.mxu0 %v1870
        %2143 = vmatprep.subr.bf16.mxu0 %v1869
        %2144 = vmatpush2.bf16.msra.mxu0 %v1868
        %2145 = vmatprep.subr.bf16.mxu0 %v1867
        %2146 = vmatpush2.bf16.msra.mxu0 %v1866
        %2147 = vmatprep.mubr.bf16.mxu0 %v353
        %2148 = vmatmul.mubr.bf16.gmra.mxu0 %v352
        %v2149 = vpop.f32.mrf.mxu0
        %v2150 = vadd.f32 %v2109, %v2149
        %v2151 = vpop.f32.mrf.mxu0
        %v2152 = vadd.f32 %v2111, %v2151
        %v2153 = vpop.f32.mrf.mxu0
        %v2154 = vpop.f32.mrf.mxu0
        %2155 = vdwg.mxu0
        %2156 = vmatprep.subr.bf16.mxu0 %v1897
        %2157 = vmatpush1.bf16.msra.mxu0 %v1896
        %2158 = vmatprep.subr.bf16.mxu0 %v1895
        %2159 = vmatpush1.bf16.msra.mxu0 %v1894
        %2160 = vmatprep.subr.bf16.mxu0 %v1893
        %2161 = vmatpush1.bf16.msra.mxu0 %v1892
        %2162 = vmatprep.subr.bf16.mxu0 %v1891
        %2163 = vmatpush1.bf16.msra.mxu0 %v1890
        %2164 = vmatprep.subr.bf16.mxu0 %v1889
        %2165 = vmatpush1.bf16.msra.mxu0 %v1888
        %2166 = vmatprep.subr.bf16.mxu0 %v1887
        %2167 = vmatpush1.bf16.msra.mxu0 %v1886
        %2168 = vmatprep.subr.bf16.mxu0 %v1885
        %2169 = vmatpush1.bf16.msra.mxu0 %v1884
        %2170 = vmatprep.subr.bf16.mxu0 %v1883
        %2171 = vmatpush1.bf16.msra.mxu0 %v1882
        %2172 = vmatprep.subr.bf16.mxu0 %v1913
        %2173 = vmatpush2.bf16.msra.mxu0 %v1912
        %2174 = vmatprep.subr.bf16.mxu0 %v1911
        %2175 = vmatpush2.bf16.msra.mxu0 %v1910
        %2176 = vmatprep.subr.bf16.mxu0 %v1909
        %2177 = vmatpush2.bf16.msra.mxu0 %v1908
        %2178 = vmatprep.subr.bf16.mxu0 %v1907
        %2179 = vmatpush2.bf16.msra.mxu0 %v1906
        %2180 = vmatprep.subr.bf16.mxu0 %v1905
        %2181 = vmatpush2.bf16.msra.mxu0 %v1904
        %2182 = vmatprep.subr.bf16.mxu0 %v1903
        %2183 = vmatpush2.bf16.msra.mxu0 %v1902
        %2184 = vmatprep.subr.bf16.mxu0 %v1901
        %2185 = vmatpush2.bf16.msra.mxu0 %v1900
        %2186 = vmatprep.subr.bf16.mxu0 %v1899
        %2187 = vmatpush2.bf16.msra.mxu0 %v1898
        %2188 = vmatprep.mubr.bf16.mxu0 %v355
        %2189 = vmatmul.mubr.bf16.gmra.mxu0 %v354
        %v2190 = vpop.f32.mrf.mxu0
        %v2191 = vadd.f32 %v2150, %v2190
        %v2192 = vpop.f32.mrf.mxu0
        %v2193 = vadd.f32 %v2152, %v2192
        %v2194 = vpop.f32.mrf.mxu0
        %v2195 = vpop.f32.mrf.mxu0
        %2196 = vdwg.mxu0
        %2197 = vmatprep.subr.bf16.mxu0 %v1929
        %2198 = vmatpush1.bf16.msra.mxu0 %v1928
        %2199 = vmatprep.subr.bf16.mxu0 %v1927
        %2200 = vmatpush1.bf16.msra.mxu0 %v1926
        %2201 = vmatprep.subr.bf16.mxu0 %v1925
        %2202 = vmatpush1.bf16.msra.mxu0 %v1924
        %2203 = vmatprep.subr.bf16.mxu0 %v1923
        %2204 = vmatpush1.bf16.msra.mxu0 %v1922
        %2205 = vmatprep.subr.bf16.mxu0 %v1921
        %2206 = vmatpush1.bf16.msra.mxu0 %v1920
        %2207 = vmatprep.subr.bf16.mxu0 %v1919
        %2208 = vmatpush1.bf16.msra.mxu0 %v1918
        %2209 = vmatprep.subr.bf16.mxu0 %v1917
        %2210 = vmatpush1.bf16.msra.mxu0 %v1916
        %2211 = vmatprep.subr.bf16.mxu0 %v1915
        %2212 = vmatpush1.bf16.msra.mxu0 %v1914
        %2213 = vmatprep.subr.bf16.mxu0 %v1945
        %2214 = vmatpush2.bf16.msra.mxu0 %v1944
        %2215 = vmatprep.subr.bf16.mxu0 %v1943
        %2216 = vmatpush2.bf16.msra.mxu0 %v1942
        %2217 = vmatprep.subr.bf16.mxu0 %v1941
        %2218 = vmatpush2.bf16.msra.mxu0 %v1940
        %2219 = vmatprep.subr.bf16.mxu0 %v1939
        %2220 = vmatpush2.bf16.msra.mxu0 %v1938
        %2221 = vmatprep.subr.bf16.mxu0 %v1937
        %2222 = vmatpush2.bf16.msra.mxu0 %v1936
        %2223 = vmatprep.subr.bf16.mxu0 %v1935
        %2224 = vmatpush2.bf16.msra.mxu0 %v1934
        %2225 = vmatprep.subr.bf16.mxu0 %v1933
        %2226 = vmatpush2.bf16.msra.mxu0 %v1932
        %2227 = vmatprep.subr.bf16.mxu0 %v1931
        %2228 = vmatpush2.bf16.msra.mxu0 %v1930
        %2229 = vmatprep.mubr.bf16.mxu0 %v357
        %2230 = vmatmul.mubr.bf16.gmra.mxu0 %v356
        %v2231 = vpop.f32.mrf.mxu0
        %v2232 = vadd.f32 %v2191, %v2231
        %v2233 = vpop.f32.mrf.mxu0
        %v2234 = vadd.f32 %v2193, %v2233
        %v2235 = vpop.f32.mrf.mxu0
        %v2236 = vpop.f32.mrf.mxu0
        %2237 = vdwg.mxu0
        %v2238 = vld [vmem:[%s301] sm:$0x3]
        %v2240 = vlaneseq
        %v2241 = vshrl.u32 %v2240, 7
        %v2242 = vsub.s32 0, %v2241
        %v2243 = vrot.slane %v2238, %v2242
        %v2244 = vlaneseq
        %v2245 = vshrl.u32 %v2244, 7
        %v2246 = vsub.s32 1, %v2245
        %v2247 = vrot.slane %v2238, %v2246
        %v2250 = vadd.f32 %v2232, %v2243
        %v2251 = vadd.f32 %v2234, %v2247
        %v2252 = vxor.u32 %v2250, 2147483648
        %v2253 = vxor.u32 %v2251, 2147483648
        %v2254 = vmul.f32 %v2252, 1.442695
        %v2255 = vpow.pop %v2254
        %v2256 = vmul.f32 %v2253, 1.442695
        %v2257 = vpow.pop %v2256
        %v2258 = vadd.f32 %v2255, 1.0
        %v2259 = vadd.f32 %v2257, 1.0
        %v2260 = vrcp.pop %v2258
        %v2261 = vmul.f32 1.0, %v2260
        %v2262 = vrcp.pop %v2259
        %v2263 = vmul.f32 1.0, %v2262
        %s2264 = smul.u32 %s21, 256
        %s2265 = sshra.s32 %s2264, 7
        %s2266 = sand.u32 %s2264, 127
        %s2267 = smul.addr %s2265, 8
        %s2268 = scalar_lea.vmem [#allocation2], %s2267
        %v2269 = vld [vmem:[%s2268] sm:$0xff]
        %v2270 = vld [vmem:[%s2268 + $0x8] sm:$0xff]
        %s2271 = smul.addr %s2265, 8
        %s2272 = scalar_lea.vmem [#allocation5], %s2271
        %v2273 = vld [vmem:[%s2272] sm:$0xff]
        %v2274 = vld [vmem:[%s2272 + $0x8] sm:$0xff]
        %v2275 = vsub.f32 %v2269, %v2273
        %v2276 = vsub.f32 %v2270, %v2274
        %v2277 = vmul.f32 %v2261, %v2275
        %v2278 = vmul.f32 %v2263, %v2276
        %v2279 = vadd.f32 %v2273, %v2277
        %v2280 = vadd.f32 %v2274, %v2278
        %2281 = vst [vmem:[%s337] sm:$0xff] %v2279
        %2282 = vst [vmem:[%s337 + $0x8] sm:$0xff] %v2280
        %s2283 = sand.u32 %s149, 1
        %s2284 = scalar_lea.sflag [#allocation4], %s2283
        %s2285 = sand.u32 %s149, 1
        %s2286 = smul.addr %s2285, 16
        %s2287 = scalar_lea.vmem [#allocation10], %s2286
        // Predicated region
        $region61: #{tpu_custom_call.1} parent=39 // pred_check
          %p2288 = pneg %p159
        $region62: #{tpu_custom_call.1} parent=39 // pred_check_branch
          %2290 = sbr.rel (%p2288) target = $region64
        $region63: #{tpu_custom_call.1} parent=39 // pred_region
          %s2291 = smul.u32 2, %s21
          %s2293 = ssub.s32 256, 256
          %2294 = vsyncadd %s2284, %s2293
          %s2295 = smul.addr %s2291, 128
          %s2296 = scalar_lea.hbm %s5, %s2295
          %s2298 = sshll.u32 %s2287, 4
          %s2299 = int_to_ptr.vmem [resolvable:$true] %s2298
          %2301 = dma.vmem_to_hbm [thread:$0]  %s2299, 256, %s2296, %s2284
        $region64: #{tpu_custom_call.1} parent=39 // pred_fallthru
          _
      $region40: #{tpu_custom_call.1} parent=5 // pred_fallthru
        _
      %p2302 = scmp.le.s32.totalorder 2, %s16
      // Predicated region
      $region65: #{tpu_custom_call.1} parent=5 // pred_check
        %p2303 = pneg %p2302
      $region66: #{tpu_custom_call.1} parent=5 // pred_check_branch
        %2305 = sbr.rel (%p2303) target = $region68
      $region67: #{tpu_custom_call.1} parent=5 // pred_region
        %s2306 = ssub.s32 %s16, 2
        // Predicated region
        $region69: #{tpu_custom_call.1} parent=67 // pred_check
          %p2307 = pneg %p165
        $region70: #{tpu_custom_call.1} parent=67 // pred_check_branch
          %2309 = sbr.rel (%p2307) target = $region72
        $region71: #{tpu_custom_call.1} parent=67 // pred_region
          %s2310 = sand.u32 %s150, 1
          %s2311 = scalar_lea.sflag [#allocation4], %s2310
          %s2312 = sand.u32 %s150, 1
          %s2313 = smul.addr %s2312, 16
          %s2314 = scalar_lea.vmem [#allocation10], %s2313
          %2315 = dma.done %s2311, 256
        $region72: #{tpu_custom_call.1} parent=67 // pred_fallthru
          _
      $region68: #{tpu_custom_call.1} parent=5 // pred_fallthru
        _
    $region6: #{tpu_custom_call.1} parent=1 // loop_footer
      %s20 = sadd.s32 1, %s16
    $region7: #{tpu_custom_call.1} parent=1 // loop_footer_branch
      %15 = sbr.rel target = $region3
    $region8: #{tpu_custom_call.1} parent=1 // loop_exit
      _
    %2316 = vsyncpa [#allocation3], 1
    %s2317 = scalar_lea.sflag [#allocation3], 1
    %2318 = vsyncpa %s2317, 1
    %2319 = vsyncpa [#allocation6], 1
    %2320 = vsyncpa [#allocation4], 1
    %s2321 = scalar_lea.sflag [#allocation4], 1
    %2322 = vsyncpa %s2321, 1

</llo_original>
